<compile_context>
chip_gen: v6e
topology: v6e:2x2x1
jax: 0.10.0
libtpu: 0.0.40
codegen_flags: <defaults>
</compile_context>

<pallas_src>
import math

import numpy as np
import jax
import jax.numpy as jnp
from jax.experimental import pallas as pl
from jax.experimental.pallas import tpu as pltpu

_LANE = 128


def _r8(n):
    return -(-n // 8) * 8


# -------------------------- constant permutation / mask matrices --------------------------

def _perm_and_masks(b, t, ta):
    """One-hot permutation matrices for the (s,a) interleave / query gather / cross gather,
    plus block-diagonal additive attention masks.  All static, built once on host."""
    enc_len = 2 * t if t > 1 else 1 + t
    apred_len = ta - (t - 1)
    n_tok = b * (1 + t + ta)                     # rows of X = [emb_t; state_x; action_x]

    P_enc = np.zeros((b * enc_len, n_tok), np.float32)
    P_apred = np.zeros((b * apred_len, n_tok), np.float32)
    P_cross = np.zeros((b * 2, b * enc_len), np.float32)

    for bi in range(b):
        col_s = lambda i: b + bi * t + i
        col_a = lambda i: b + b * t + bi * ta + i
        row = bi * enc_len
        P_enc[row, bi] = 1.0                      # time token
        row += 1
        if t > 1:
            for i in range(t - 1):                # s0,a0,...,s_{t-2},a_{t-2}
                P_enc[row, col_s(i)] = 1.0; row += 1
                P_enc[row, col_a(i)] = 1.0; row += 1
            P_enc[row, col_s(t - 1)] = 1.0        # current state
        else:
            P_enc[row, col_s(0)] = 1.0
        for j in range(apred_len):                # action-prediction queries
            P_apred[bi * apred_len + j, col_a(t - 1 + j)] = 1.0
        P_cross[2 * bi, bi * enc_len] = 1.0                  # time token
        P_cross[2 * bi + 1, (bi + 1) * enc_len - 1] = 1.0    # current-state token

    NEG = -1e9
    mask_self = np.full((b * enc_len, b * enc_len), NEG, np.float32)
    mask_cross = np.full((b * apred_len, b * 2), NEG, np.float32)
    for bi in range(b):
        mask_self[bi * enc_len:(bi + 1) * enc_len, bi * enc_len:(bi + 1) * enc_len] = 0.0
        mask_cross[bi * apred_len:(bi + 1) * apred_len, 2 * bi:2 * bi + 2] = 0.0
    return P_enc, P_apred, P_cross, mask_self, mask_cross


# -------------------------- param packing: one lane-padded VMEM slab --------------------------

def _pack_slab(params, cfg, b, t, ta):
    D = cfg.embed_dim
    gsl = cfg.goal_seq_len
    P_enc, P_apred, P_cross, mask_self, mask_cross = _perm_and_masks(b, t, ta)

    pos = params["pos_emb"]                                   # (seq_size, D)
    pos_s = jnp.tile(pos[gsl:gsl + t, :], (b, 1))             # (b*t, D)
    pos_a = jnp.tile(pos[gsl:gsl + ta, :], (b, 1))            # (b*ta, D)

    m, d = params["mamba"], params["decoder"]
    hid = params["pred_l1"][0].shape[1]                       # 100
    hid_pad = _LANE                                           # pad to 128 lanes / rows
    pad = hid_pad - hid

    arrays = {
        # time MLP
        "tw1": params["time_l1"][0], "tb1": params["time_l1"][1],
        "tw2": params["time_l2"][0], "tb2": params["time_l2"][1],
        # token embeddings; pos-emb folded into per-row biases
        "tok_w": params["tok_emb"][0],
        "bias_s": params["tok_emb"][1] + pos_s,               # (b*t, D)
        "act_w": params["action_emb"][0],
        "bias_a": params["action_emb"][1] + pos_a,            # (b*ta, D)
        # permutation matrices
        "P_enc": jnp.asarray(P_enc), "P_apred": jnp.asarray(P_apred),
        # mamba stand-in (self-attention block), fused QKV
        "m_wqkv": jnp.concatenate([m["wq"][0], m["wk"][0], m["wv"][0]], axis=1),
        "m_bqkv": jnp.concatenate([m["wq"][1], m["wk"][1], m["wv"][1]], axis=1),
        "m_wo": m["wo"][0], "m_bo": m["wo"][1],
        "m_f1": m["ff1"][0], "m_fb1": m["ff1"][1],
        "m_f2": m["ff2"][0], "m_fb2": m["ff2"][1],
        "mask_self": jnp.asarray(mask_self),
        "P_cross": jnp.asarray(P_cross),
        # decoder stand-in (cross-attention block), fused KV
        "d_wq": d["wq"][0], "d_bq": d["wq"][1],
        "d_wkv": jnp.concatenate([d["wk"][0], d["wv"][0]], axis=1),
        "d_bkv": jnp.concatenate([d["wk"][1], d["wv"][1]], axis=1),
        "d_wo": d["wo"][0], "d_bo": d["wo"][1],
        "d_f1": d["ff1"][0], "d_fb1": d["ff1"][1],
        "d_f2": d["ff2"][0], "d_fb2": d["ff2"][1],
        "mask_cross": jnp.asarray(mask_cross),
        # prediction head, hidden padded 100 -> 128
        "p_w1": jnp.pad(params["pred_l1"][0], ((0, 0), (0, pad))),
        "p_b1": jnp.pad(params["pred_l1"][1], ((0, 0), (0, pad))),
        "p_w2": jnp.pad(params["pred_l2"][0], ((0, pad), (0, 0))),
        "p_b2": params["pred_l2"][1],
    }

    layout, off = {}, 0
    for name, a in arrays.items():
        layout[name] = (off, a.shape[0], a.shape[1])
        off += _r8(a.shape[0])
    slab = jnp.zeros((off, _LANE), jnp.float32)
    for name, a in arrays.items():
        o, r, c = layout[name]
        slab = slab.at[o:o + r, :c].set(a.astype(jnp.float32))
    return slab, layout


# -------------------------- fused Pallas kernel --------------------------

def _make_fused_kernel(layout, b, t, ta, D):
    enc_len = 2 * t if t > 1 else 1 + t
    apred_len = ta - (t - 1)
    scale = 1.0 / math.sqrt(D)
    f32 = jnp.float32

    def kernel(sin_ref, st_ref, ac_ref, slab_ref, out_ref):
        def ld(name):                                   # static sublane/lane slice of the slab
            off, r, c = layout[name]
            return slab_ref[off:off + r, 0:c]

        def lin(x, wname, bname):
            return jnp.dot(x, ld(wname), preferred_element_type=f32) + ld(bname)

        def mish(y):                                    # x * tanh(softplus(x)), stable
            sp = jnp.maximum(y, 0.0) + jnp.log(1.0 + jnp.exp(-jnp.abs(y)))
            return y * jnp.tanh(sp)

        def softmax(s):                                 # exact (approx=False) for parity
            mx = jnp.max(s, axis=-1, keepdims=True)
            e = jnp.exp(s - mx)
            return e * pl.reciprocal(jnp.sum(e, axis=-1, keepdims=True), approx=False)

        # ----- time embedding MLP (SinusoidalPosEmb precomputed in the XLA prolog) -----
        emb_t = lin(mish(lin(sin_ref[...], "tw1", "tb1")), "tw2", "tb2")        # (b, D)

        # ----- token embeddings; positional embedding pre-folded into per-row biases -----
        state_x = jnp.dot(st_ref[...], ld("tok_w"), preferred_element_type=f32) + ld("bias_s")
        action_x = jnp.dot(ac_ref[...], ld("act_w"), preferred_element_type=f32) + ld("bias_a")

        # stacked token matrix X = [emb_t; state_x; action_x]   -> (b*(1+t+ta), D)
        X = jnp.concatenate([emb_t, state_x, action_x], axis=0)

        # (s,a) interleave and action-query gather as permutation matmuls (MXU)
        enc = jnp.dot(ld("P_enc"), X, preferred_element_type=f32)       # (b*enc_len, D)
        apred = jnp.dot(ld("P_apred"), X, preferred_element_type=f32)   # (b*apred_len, D)

        # ----- mamba stand-in: self-attention + MLP, batched with block-diag mask -----
        qkv = lin(enc, "m_wqkv", "m_bqkv")                               # (b*enc_len, 3D)
        q, k, v = qkv[:, 0:D], qkv[:, D:2 * D], qkv[:, 2 * D:3 * D]
        s = jax.lax.dot_general(q, k, (((1,), (1,)), ((), ())),
                                preferred_element_type=f32) * scale
        p = softmax(s + ld("mask_self"))
        a = lin(jnp.dot(p, v, preferred_element_type=f32), "m_wo", "m_bo")
        h = enc + a
        h = h + lin(jax.nn.gelu(lin(h, "m_f1", "m_fb1")), "m_f2", "m_fb2")

        # cross memory = [time token, current-state token] per batch, via permutation matmul
        cross = jnp.dot(ld("P_cross"), h, preferred_element_type=f32)    # (b*2, D)

        # ----- decoder stand-in: cross-attention + MLP, batched with block mask -----
        q = lin(apred, "d_wq", "d_bq")                                   # (b*apred_len, D)
        kv = lin(cross, "d_wkv", "d_bkv")                                # (b*2, 2D)
        k, v = kv[:, 0:D], kv[:, D:2 * D]
        s = jax.lax.dot_general(q, k, (((1,), (1,)), ((), ())),
                                preferred_element_type=f32) * scale
        p = softmax(s + ld("mask_cross"))
        a = lin(jnp.dot(p, v, preferred_element_type=f32), "d_wo", "d_bo")
        g = apred + a
        g = g + lin(jax.nn.gelu(lin(g, "d_f1", "d_fb1")), "d_f2", "d_fb2")

        # ----- action prediction head (hidden padded to 128 lanes in the wrapper) -----
        hh = jax.nn.gelu(lin(g, "p_w1", "p_b1"))                         # (b*apred_len, 128)
        out_ref[...] = lin(hh, "p_w2", "p_b2").astype(out_ref.dtype)

    return kernel, apred_len


# -------------------------- model glue --------------------------

class Cfg:
    state_dim = 8
    action_dim = 4
    embed_dim = 32
    goal_seq_len = 1
    obs_seq_len = 4
    action_seq_len = 8
    goal_conditioned = True


def init_params(key, cfg):
    D = cfg.embed_dim

    def dense(k, fan_in, fan_out):
        # matches _init_weights: normal(0, 0.02) weight, zero bias (bias stored as (1, N))
        w = 0.02 * jax.random.normal(k, (fan_in, fan_out), jnp.float32)
        b = jnp.zeros((1, fan_out), jnp.float32)
        return (w, b)

    ks = jax.random.split(key, 18)
    seq_size = cfg.goal_seq_len + cfg.obs_seq_len - 1 + cfg.action_seq_len
    return {
        "tok_emb": dense(ks[0], cfg.state_dim, D),
        "action_emb": dense(ks[1], cfg.action_dim, D),
        "time_l1": dense(ks[2], D, 2 * D),
        "time_l2": dense(ks[3], 2 * D, D),
        "pos_emb": jnp.zeros((seq_size, D), jnp.float32),   # nn.Parameter(torch.zeros)
        "mamba": {
            "wq": dense(ks[4], D, D), "wk": dense(ks[5], D, D),
            "wv": dense(ks[6], D, D), "wo": dense(ks[7], D, D),
            "ff1": dense(ks[8], D, 4 * D), "ff2": dense(ks[9], 4 * D, D),
        },
        "decoder": {
            "wq": dense(ks[10], D, D), "wk": dense(ks[11], D, D),
            "wv": dense(ks[12], D, D), "wo": dense(ks[13], D, D),
            "ff1": dense(ks[14], D, 4 * D), "ff2": dense(ks[15], 4 * D, D),
        },
        "pred_l1": dense(ks[16], D, 100),
        "pred_l2": dense(ks[17], 100, cfg.action_dim),
    }


def sinusoidal_pos_emb(x, dim):
    """x: (b, 1) -> (b, dim). Same as diffusion SinusoidalPosEmb; computed in the XLA prolog."""
    half = dim // 2
    scale = math.log(10000.0) / (half - 1)
    freqs = jnp.exp(jnp.arange(half, dtype=jnp.float32) * -scale)
    e = x * freqs[None, :]
    return jnp.concatenate([jnp.sin(e), jnp.cos(e)], axis=-1)


def forward(params, cfg, actions, time, states, goals, uncond=False):
    # NOTE: goal_embed is dead code in the reference forward (computed, never used); it is
    # omitted here, so `goals`/`uncond` do not affect the output (matches reference output).
    b, t, _ = states.shape
    ta = actions.shape[1]
    D = cfg.embed_dim

    sin_emb = sinusoidal_pos_emb(time.reshape(b, 1), D)          # (b, D)
    states2d = states.reshape(b * t, cfg.state_dim)              # (b*t, state_dim)
    actions2d = actions.reshape(b * ta, cfg.action_dim)          # (b*ta, action_dim)

    # All parameters / constant matrices -> one lane-padded VMEM slab (single DMA).
    slab, layout = _pack_slab(params, cfg, b, t, ta)
    kernel, apred_len = _make_fused_kernel(layout, b, t, ta, D)

    # Grid-less single-block launch: no pipeline scaffolding, everything resident in VMEM.
    out2d = pl.pallas_call(
        kernel,
        out_shape=jax.ShapeDtypeStruct((b * apred_len, cfg.action_dim), jnp.float32),
    )(sin_emb, states2d, actions2d, slab)
    return out2d.reshape(b, apred_len, cfg.action_dim)


if __name__ == "__main__":
    cfg = Cfg()
    key = jax.random.PRNGKey(0)
    k_par, k_act, k_time, k_state, k_goal = jax.random.split(key, 5)
    params = init_params(k_par, cfg)

    b = 2
    t = cfg.obs_seq_len
    actions = jax.random.normal(k_act, (b, t - 1 + cfg.action_seq_len, cfg.action_dim),
                                jnp.float32)
    time = jax.random.uniform(k_time, (b,), jnp.float32)
    states = jax.random.normal(k_state, (b, t, cfg.state_dim), jnp.float32)
    goals = jax.random.normal(k_goal, (b, cfg.goal_seq_len, cfg.state_dim), jnp.float32)

    fwd = jax.jit(lambda a, tm, s, g: forward(params, cfg, a, tm, s, g))
    out = jax.block_until_ready(fwd(actions, time, states, goals))
    assert out.shape == (b, cfg.action_seq_len, cfg.action_dim), out.shape
    assert out.dtype == jnp.float32
    assert bool(jnp.all(jnp.isfinite(out)))
    print("KERNEL_OK")
</pallas_src>

<mosaic_0001>
module attributes {stable_mosaic.version = 11 : i64} {
  func.func @kernel(%arg0: memref<2x32xf32, #tpu.memory_space<vmem>>, %arg1: memref<8x8xf32, #tpu.memory_space<vmem>>, %arg2: memref<22x4xf32, #tpu.memory_space<vmem>>, %arg3: memref<960x128xf32, #tpu.memory_space<vmem>>, %arg4: memref<16x4xf32, #tpu.memory_space<vmem>>) attributes {dimension_semantics = [], scalar_prefetch = 0 : i64, scratch_operands = 0 : i64, tpu.core_type = #tpu.core_type<tc>} {
    %c0 = arith.constant 0 : index
    %c0_0 = arith.constant 0 : index
    %0 = vector.load %arg0[%c0, %c0_0] : memref<2x32xf32, #tpu.memory_space<vmem>>, vector<2x32xf32>
    %c0_1 = arith.constant 0 : index
    %c0_2 = arith.constant 0 : index
    %1 = vector.load %arg3[%c0_1, %c0_2] : memref<960x128xf32, #tpu.memory_space<vmem>>, vector<32x64xf32>
    %cst = arith.constant dense<0.000000e+00> : vector<2x64xf32>
    %2 = tpu.matmul %0, %1, %cst {dimension_numbers = #tpu.dot_dimension_numbers<[1], [0], [0], [1], [0, 0, 1, 1], [], []>} : vector<2x32xf32>, vector<32x64xf32>, vector<2x64xf32> -> vector<2x64xf32>
    %c32 = arith.constant 32 : index
    %c0_3 = arith.constant 0 : index
    %3 = vector.load %arg3[%c32, %c0_3] : memref<960x128xf32, #tpu.memory_space<vmem>>, vector<1x64xf32>
    %4 = vector.broadcast %3 : vector<1x64xf32> to vector<2x64xf32>
    %5 = arith.addf %2, %4 : vector<2x64xf32>
    %cst_4 = arith.constant 0.000000e+00 : f32
    %6 = vector.broadcast %cst_4 : f32 to vector<2x64xf32>
    %7 = arith.maximumf %5, %6 : vector<2x64xf32>
    %8 = math.absf %5 : vector<2x64xf32>
    %cst_5 = arith.constant 0.000000e+00 : f32
    %9 = vector.broadcast %cst_5 : f32 to vector<2x64xf32>
    %10 = arith.subf %9, %8 : vector<2x64xf32>
    %11 = math.exp %10 : vector<2x64xf32>
    %cst_6 = arith.constant 1.000000e+00 : f32
    %12 = vector.broadcast %cst_6 : f32 to vector<2x64xf32>
    %13 = arith.addf %12, %11 : vector<2x64xf32>
    %14 = math.log %13 : vector<2x64xf32>
    %15 = arith.addf %7, %14 : vector<2x64xf32>
    %16 = math.tanh %15 : vector<2x64xf32>
    %17 = arith.mulf %5, %16 : vector<2x64xf32>
    %c40 = arith.constant 40 : index
    %c0_7 = arith.constant 0 : index
    %18 = vector.load %arg3[%c40, %c0_7] : memref<960x128xf32, #tpu.memory_space<vmem>>, vector<64x32xf32>
    %cst_8 = arith.constant dense<0.000000e+00> : vector<2x32xf32>
    %19 = tpu.matmul %17, %18, %cst_8 {dimension_numbers = #tpu.dot_dimension_numbers<[1], [0], [0], [1], [0, 0, 1, 1], [], []>} : vector<2x64xf32>, vector<64x32xf32>, vector<2x32xf32> -> vector<2x32xf32>
    %c104 = arith.constant 104 : index
    %c0_9 = arith.constant 0 : index
    %20 = vector.load %arg3[%c104, %c0_9] : memref<960x128xf32, #tpu.memory_space<vmem>>, vector<1x32xf32>
    %21 = vector.broadcast %20 : vector<1x32xf32> to vector<2x32xf32>
    %22 = arith.addf %19, %21 : vector<2x32xf32>
    %c0_10 = arith.constant 0 : index
    %c0_11 = arith.constant 0 : index
    %23 = vector.load %arg1[%c0_10, %c0_11] : memref<8x8xf32, #tpu.memory_space<vmem>>, vector<8x8xf32>
    %c112 = arith.constant 112 : index
    %c0_12 = arith.constant 0 : index
    %24 = vector.load %arg3[%c112, %c0_12] : memref<960x128xf32, #tpu.memory_space<vmem>>, vector<8x32xf32>
    %cst_13 = arith.constant dense<0.000000e+00> : vector<8x32xf32>
    %25 = tpu.matmul %23, %24, %cst_13 {dimension_numbers = #tpu.dot_dimension_numbers<[1], [0], [0], [1], [0, 0, 1, 1], [], []>} : vector<8x8xf32>, vector<8x32xf32>, vector<8x32xf32> -> vector<8x32xf32>
    %c120 = arith.constant 120 : index
    %c0_14 = arith.constant 0 : index
    %26 = vector.load %arg3[%c120, %c0_14] : memref<960x128xf32, #tpu.memory_space<vmem>>, vector<8x32xf32>
    %27 = arith.addf %25, %26 : vector<8x32xf32>
    %c0_15 = arith.constant 0 : index
    %c0_16 = arith.constant 0 : index
    %28 = vector.load %arg2[%c0_15, %c0_16] : memref<22x4xf32, #tpu.memory_space<vmem>>, vector<22x4xf32>
    %c128 = arith.constant 128 : index
    %c0_17 = arith.constant 0 : index
    %29 = vector.load %arg3[%c128, %c0_17] : memref<960x128xf32, #tpu.memory_space<vmem>>, vector<4x32xf32>
    %cst_18 = arith.constant dense<0.000000e+00> : vector<22x32xf32>
    %30 = tpu.matmul %28, %29, %cst_18 {dimension_numbers = #tpu.dot_dimension_numbers<[1], [0], [0], [1], [0, 0, 1, 1], [], []>} : vector<22x4xf32>, vector<4x32xf32>, vector<22x32xf32> -> vector<22x32xf32>
    %c136 = arith.constant 136 : index
    %c0_19 = arith.constant 0 : index
    %31 = vector.load %arg3[%c136, %c0_19] : memref<960x128xf32, #tpu.memory_space<vmem>>, vector<22x32xf32>
    %32 = arith.addf %30, %31 : vector<22x32xf32>
    %33 = tpu.concatenate %22, %27, %32 in 0 : vector<2x32xf32>, vector<8x32xf32>, vector<22x32xf32> -> vector<32x32xf32>
    %c160 = arith.constant 160 : index
    %c0_20 = arith.constant 0 : index
    %34 = vector.load %arg3[%c160, %c0_20] : memref<960x128xf32, #tpu.memory_space<vmem>>, vector<16x32xf32>
    %cst_21 = arith.constant dense<0.000000e+00> : vector<16x32xf32>
    %35 = tpu.matmul %34, %33, %cst_21 {dimension_numbers = #tpu.dot_dimension_numbers<[1], [0], [0], [1], [0, 0, 1, 1], [], []>} : vector<16x32xf32>, vector<32x32xf32>, vector<16x32xf32> -> vector<16x32xf32>
    %c176 = arith.constant 176 : index
    %c0_22 = arith.constant 0 : index
    %36 = vector.load %arg3[%c176, %c0_22] : memref<960x128xf32, #tpu.memory_space<vmem>>, vector<16x32xf32>
    %cst_23 = arith.constant dense<0.000000e+00> : vector<16x32xf32>
    %37 = tpu.matmul %36, %33, %cst_23 {dimension_numbers = #tpu.dot_dimension_numbers<[1], [0], [0], [1], [0, 0, 1, 1], [], []>} : vector<16x32xf32>, vector<32x32xf32>, vector<16x32xf32> -> vector<16x32xf32>
    %c192 = arith.constant 192 : index
    %c0_24 = arith.constant 0 : index
    %38 = vector.load %arg3[%c192, %c0_24] : memref<960x128xf32, #tpu.memory_space<vmem>>, vector<32x96xf32>
    %cst_25 = arith.constant dense<0.000000e+00> : vector<16x96xf32>
    %39 = tpu.matmul %35, %38, %cst_25 {dimension_numbers = #tpu.dot_dimension_numbers<[1], [0], [0], [1], [0, 0, 1, 1], [], []>} : vector<16x32xf32>, vector<32x96xf32>, vector<16x96xf32> -> vector<16x96xf32>
    %c224 = arith.constant 224 : index
    %c0_26 = arith.constant 0 : index
    %40 = vector.load %arg3[%c224, %c0_26] : memref<960x128xf32, #tpu.memory_space<vmem>>, vector<1x96xf32>
    %41 = vector.broadcast %40 : vector<1x96xf32> to vector<16x96xf32>
    %42 = arith.addf %39, %41 : vector<16x96xf32>
    %43 = vector.extract_strided_slice %42 {offsets = [0, 0], sizes = [16, 32], strides = [1, 1]} : vector<16x96xf32> to vector<16x32xf32>
    %44 = vector.extract_strided_slice %42 {offsets = [0, 32], sizes = [16, 32], strides = [1, 1]} : vector<16x96xf32> to vector<16x32xf32>
    %45 = vector.extract_strided_slice %42 {offsets = [0, 64], sizes = [16, 32], strides = [1, 1]} : vector<16x96xf32> to vector<16x32xf32>
    %cst_27 = arith.constant dense<0.000000e+00> : vector<16x16xf32>
    %46 = tpu.matmul %43, %44, %cst_27 {dimension_numbers = #tpu.dot_dimension_numbers<[1], [1], [0], [0], [0, 0, 1, 0], [], []>} : vector<16x32xf32>, vector<16x32xf32>, vector<16x16xf32> -> vector<16x16xf32>
    %cst_28 = arith.constant 0.176776692 : f32
    %47 = vector.broadcast %cst_28 : f32 to vector<16x16xf32>
    %48 = arith.mulf %46, %47 : vector<16x16xf32>
    %c448 = arith.constant 448 : index
    %c0_29 = arith.constant 0 : index
    %49 = vector.load %arg3[%c448, %c0_29] : memref<960x128xf32, #tpu.memory_space<vmem>>, vector<16x16xf32>
    %50 = arith.addf %48, %49 : vector<16x16xf32>
    %cst_30 = arith.constant dense<0xFF800000> : vector<16xf32>
    %51 = vector.multi_reduction <maximumf>, %50, %cst_30 [1] : vector<16x16xf32> to vector<16xf32>
    %52 = vector.shape_cast %51 : vector<16xf32> to vector<16x1xf32>
    %53 = vector.broadcast %52 : vector<16x1xf32> to vector<16x16xf32>
    %54 = arith.subf %50, %53 : vector<16x16xf32>
    %55 = math.exp %54 : vector<16x16xf32>
    %cst_31 = arith.constant dense<0.000000e+00> : vector<16xf32>
    %56 = vector.multi_reduction <add>, %55, %cst_31 [1] : vector<16x16xf32> to vector<16xf32>
    %57 = vector.shape_cast %56 : vector<16xf32> to vector<16x1xf32>
    %58 = tpu.reciprocal %57 : vector<16x1xf32> -> vector<16x1xf32>
    %59 = vector.broadcast %58 : vector<16x1xf32> to vector<16x16xf32>
    %60 = arith.mulf %55, %59 : vector<16x16xf32>
    %cst_32 = arith.constant dense<0.000000e+00> : vector<16x32xf32>
    %61 = tpu.matmul %60, %45, %cst_32 {dimension_numbers = #tpu.dot_dimension_numbers<[1], [0], [0], [1], [0, 0, 1, 1], [], []>} : vector<16x16xf32>, vector<16x32xf32>, vector<16x32xf32> -> vector<16x32xf32>
    %c232 = arith.constant 232 : index
    %c0_33 = arith.constant 0 : index
    %62 = vector.load %arg3[%c232, %c0_33] : memref<960x128xf32, #tpu.memory_space<vmem>>, vector<32x32xf32>
    %cst_34 = arith.constant dense<0.000000e+00> : vector<16x32xf32>
    %63 = tpu.matmul %61, %62, %cst_34 {dimension_numbers = #tpu.dot_dimension_numbers<[1], [0], [0], [1], [0, 0, 1, 1], [], []>} : vector<16x32xf32>, vector<32x32xf32>, vector<16x32xf32> -> vector<16x32xf32>
    %c264 = arith.constant 264 : index
    %c0_35 = arith.constant 0 : index
    %64 = vector.load %arg3[%c264, %c0_35] : memref<960x128xf32, #tpu.memory_space<vmem>>, vector<1x32xf32>
    %65 = vector.broadcast %64 : vector<1x32xf32> to vector<16x32xf32>
    %66 = arith.addf %63, %65 : vector<16x32xf32>
    %67 = arith.addf %35, %66 : vector<16x32xf32>
    %c272 = arith.constant 272 : index
    %c0_36 = arith.constant 0 : index
    %68 = vector.load %arg3[%c272, %c0_36] : memref<960x128xf32, #tpu.memory_space<vmem>>, vector<32x128xf32>
    %cst_37 = arith.constant dense<0.000000e+00> : vector<16x128xf32>
    %69 = tpu.matmul %67, %68, %cst_37 {dimension_numbers = #tpu.dot_dimension_numbers<[1], [0], [0], [1], [0, 0, 1, 1], [], []>} : vector<16x32xf32>, vector<32x128xf32>, vector<16x128xf32> -> vector<16x128xf32>
    %c304 = arith.constant 304 : index
    %c0_38 = arith.constant 0 : index
    %70 = vector.load %arg3[%c304, %c0_38] : memref<960x128xf32, #tpu.memory_space<vmem>>, vector<1x128xf32>
    %71 = vector.broadcast %70 : vector<1x128xf32> to vector<16x128xf32>
    %72 = arith.addf %69, %71 : vector<16x128xf32>
    %73 = arith.mulf %72, %72 : vector<16x128xf32>
    %74 = arith.mulf %72, %73 : vector<16x128xf32>
    %cst_39 = arith.constant 4.471500e-02 : f32
    %75 = vector.broadcast %cst_39 : f32 to vector<16x128xf32>
    %76 = arith.mulf %75, %74 : vector<16x128xf32>
    %77 = arith.addf %72, %76 : vector<16x128xf32>
    %cst_40 = arith.constant 0.797884583 : f32
    %78 = vector.broadcast %cst_40 : f32 to vector<16x128xf32>
    %79 = arith.mulf %78, %77 : vector<16x128xf32>
    %80 = math.tanh %79 : vector<16x128xf32>
    %cst_41 = arith.constant 1.000000e+00 : f32
    %81 = vector.broadcast %cst_41 : f32 to vector<16x128xf32>
    %82 = arith.addf %81, %80 : vector<16x128xf32>
    %cst_42 = arith.constant 5.000000e-01 : f32
    %83 = vector.broadcast %cst_42 : f32 to vector<16x128xf32>
    %84 = arith.mulf %83, %82 : vector<16x128xf32>
    %85 = arith.mulf %72, %84 : vector<16x128xf32>
    %c312 = arith.constant 312 : index
    %c0_43 = arith.constant 0 : index
    %86 = vector.load %arg3[%c312, %c0_43] : memref<960x128xf32, #tpu.memory_space<vmem>>, vector<128x32xf32>
    %cst_44 = arith.constant dense<0.000000e+00> : vector<16x32xf32>
    %87 = tpu.matmul %85, %86, %cst_44 {dimension_numbers = #tpu.dot_dimension_numbers<[1], [0], [0], [1], [0, 0, 1, 1], [], []>} : vector<16x128xf32>, vector<128x32xf32>, vector<16x32xf32> -> vector<16x32xf32>
    %c440 = arith.constant 440 : index
    %c0_45 = arith.constant 0 : index
    %88 = vector.load %arg3[%c440, %c0_45] : memref<960x128xf32, #tpu.memory_space<vmem>>, vector<1x32xf32>
    %89 = vector.broadcast %88 : vector<1x32xf32> to vector<16x32xf32>
    %90 = arith.addf %87, %89 : vector<16x32xf32>
    %91 = arith.addf %67, %90 : vector<16x32xf32>
    %c464 = arith.constant 464 : index
    %c0_46 = arith.constant 0 : index
    %92 = vector.load %arg3[%c464, %c0_46] : memref<960x128xf32, #tpu.memory_space<vmem>>, vector<4x16xf32>
    %cst_47 = arith.constant dense<0.000000e+00> : vector<4x32xf32>
    %93 = tpu.matmul %92, %91, %cst_47 {dimension_numbers = #tpu.dot_dimension_numbers<[1], [0], [0], [1], [0, 0, 1, 1], [], []>} : vector<4x16xf32>, vector<16x32xf32>, vector<4x32xf32> -> vector<4x32xf32>
    %c472 = arith.constant 472 : index
    %c0_48 = arith.constant 0 : index
    %94 = vector.load %arg3[%c472, %c0_48] : memref<960x128xf32, #tpu.memory_space<vmem>>, vector<32x32xf32>
    %cst_49 = arith.constant dense<0.000000e+00> : vector<16x32xf32>
    %95 = tpu.matmul %37, %94, %cst_49 {dimension_numbers = #tpu.dot_dimension_numbers<[1], [0], [0], [1], [0, 0, 1, 1], [], []>} : vector<16x32xf32>, vector<32x32xf32>, vector<16x32xf32> -> vector<16x32xf32>
    %c504 = arith.constant 504 : index
    %c0_50 = arith.constant 0 : index
    %96 = vector.load %arg3[%c504, %c0_50] : memref<960x128xf32, #tpu.memory_space<vmem>>, vector<1x32xf32>
    %97 = vector.broadcast %96 : vector<1x32xf32> to vector<16x32xf32>
    %98 = arith.addf %95, %97 : vector<16x32xf32>
    %c512 = arith.constant 512 : index
    %c0_51 = arith.constant 0 : index
    %99 = vector.load %arg3[%c512, %c0_51] : memref<960x128xf32, #tpu.memory_space<vmem>>, vector<32x64xf32>
    %cst_52 = arith.constant dense<0.000000e+00> : vector<4x64xf32>
    %100 = tpu.matmul %93, %99, %cst_52 {dimension_numbers = #tpu.dot_dimension_numbers<[1], [0], [0], [1], [0, 0, 1, 1], [], []>} : vector<4x32xf32>, vector<32x64xf32>, vector<4x64xf32> -> vector<4x64xf32>
    %c544 = arith.constant 544 : index
    %c0_53 = arith.constant 0 : index
    %101 = vector.load %arg3[%c544, %c0_53] : memref<960x128xf32, #tpu.memory_space<vmem>>, vector<1x64xf32>
    %102 = vector.broadcast %101 : vector<1x64xf32> to vector<4x64xf32>
    %103 = arith.addf %100, %102 : vector<4x64xf32>
    %104 = vector.extract_strided_slice %103 {offsets = [0, 0], sizes = [4, 32], strides = [1, 1]} : vector<4x64xf32> to vector<4x32xf32>
    %105 = vector.extract_strided_slice %103 {offsets = [0, 32], sizes = [4, 32], strides = [1, 1]} : vector<4x64xf32> to vector<4x32xf32>
    %cst_54 = arith.constant dense<0.000000e+00> : vector<16x4xf32>
    %106 = tpu.matmul %98, %104, %cst_54 {dimension_numbers = #tpu.dot_dimension_numbers<[1], [1], [0], [0], [0, 0, 1, 0], [], []>} : vector<16x32xf32>, vector<4x32xf32>, vector<16x4xf32> -> vector<16x4xf32>
    %cst_55 = arith.constant 0.176776692 : f32
    %107 = vector.broadcast %cst_55 : f32 to vector<16x4xf32>
    %108 = arith.mulf %106, %107 : vector<16x4xf32>
    %c768 = arith.constant 768 : index
    %c0_56 = arith.constant 0 : index
    %109 = vector.load %arg3[%c768, %c0_56] : memref<960x128xf32, #tpu.memory_space<vmem>>, vector<16x4xf32>
    %110 = arith.addf %108, %109 : vector<16x4xf32>
    %cst_57 = arith.constant dense<0xFF800000> : vector<16xf32>
    %111 = vector.multi_reduction <maximumf>, %110, %cst_57 [1] : vector<16x4xf32> to vector<16xf32>
    %112 = vector.shape_cast %111 : vector<16xf32> to vector<16x1xf32>
    %113 = vector.broadcast %112 : vector<16x1xf32> to vector<16x4xf32>
    %114 = arith.subf %110, %113 : vector<16x4xf32>
    %115 = math.exp %114 : vector<16x4xf32>
    %cst_58 = arith.constant dense<0.000000e+00> : vector<16xf32>
    %116 = vector.multi_reduction <add>, %115, %cst_58 [1] : vector<16x4xf32> to vector<16xf32>
    %117 = vector.shape_cast %116 : vector<16xf32> to vector<16x1xf32>
    %118 = tpu.reciprocal %117 : vector<16x1xf32> -> vector<16x1xf32>
    %119 = vector.broadcast %118 : vector<16x1xf32> to vector<16x4xf32>
    %120 = arith.mulf %115, %119 : vector<16x4xf32>
    %cst_59 = arith.constant dense<0.000000e+00> : vector<16x32xf32>
    %121 = tpu.matmul %120, %105, %cst_59 {dimension_numbers = #tpu.dot_dimension_numbers<[1], [0], [0], [1], [0, 0, 1, 1], [], []>} : vector<16x4xf32>, vector<4x32xf32>, vector<16x32xf32> -> vector<16x32xf32>
    %c552 = arith.constant 552 : index
    %c0_60 = arith.constant 0 : index
    %122 = vector.load %arg3[%c552, %c0_60] : memref<960x128xf32, #tpu.memory_space<vmem>>, vector<32x32xf32>
    %cst_61 = arith.constant dense<0.000000e+00> : vector<16x32xf32>
    %123 = tpu.matmul %121, %122, %cst_61 {dimension_numbers = #tpu.dot_dimension_numbers<[1], [0], [0], [1], [0, 0, 1, 1], [], []>} : vector<16x32xf32>, vector<32x32xf32>, vector<16x32xf32> -> vector<16x32xf32>
    %c584 = arith.constant 584 : index
    %c0_62 = arith.constant 0 : index
    %124 = vector.load %arg3[%c584, %c0_62] : memref<960x128xf32, #tpu.memory_space<vmem>>, vector<1x32xf32>
    %125 = vector.broadcast %124 : vector<1x32xf32> to vector<16x32xf32>
    %126 = arith.addf %123, %125 : vector<16x32xf32>
    %127 = arith.addf %37, %126 : vector<16x32xf32>
    %c592 = arith.constant 592 : index
    %c0_63 = arith.constant 0 : index
    %128 = vector.load %arg3[%c592, %c0_63] : memref<960x128xf32, #tpu.memory_space<vmem>>, vector<32x128xf32>
    %cst_64 = arith.constant dense<0.000000e+00> : vector<16x128xf32>
    %129 = tpu.matmul %127, %128, %cst_64 {dimension_numbers = #tpu.dot_dimension_numbers<[1], [0], [0], [1], [0, 0, 1, 1], [], []>} : vector<16x32xf32>, vector<32x128xf32>, vector<16x128xf32> -> vector<16x128xf32>
    %c624 = arith.constant 624 : index
    %c0_65 = arith.constant 0 : index
    %130 = vector.load %arg3[%c624, %c0_65] : memref<960x128xf32, #tpu.memory_space<vmem>>, vector<1x128xf32>
    %131 = vector.broadcast %130 : vector<1x128xf32> to vector<16x128xf32>
    %132 = arith.addf %129, %131 : vector<16x128xf32>
    %133 = arith.mulf %132, %132 : vector<16x128xf32>
    %134 = arith.mulf %132, %133 : vector<16x128xf32>
    %cst_66 = arith.constant 4.471500e-02 : f32
    %135 = vector.broadcast %cst_66 : f32 to vector<16x128xf32>
    %136 = arith.mulf %135, %134 : vector<16x128xf32>
    %137 = arith.addf %132, %136 : vector<16x128xf32>
    %cst_67 = arith.constant 0.797884583 : f32
    %138 = vector.broadcast %cst_67 : f32 to vector<16x128xf32>
    %139 = arith.mulf %138, %137 : vector<16x128xf32>
    %140 = math.tanh %139 : vector<16x128xf32>
    %cst_68 = arith.constant 1.000000e+00 : f32
    %141 = vector.broadcast %cst_68 : f32 to vector<16x128xf32>
    %142 = arith.addf %141, %140 : vector<16x128xf32>
    %cst_69 = arith.constant 5.000000e-01 : f32
    %143 = vector.broadcast %cst_69 : f32 to vector<16x128xf32>
    %144 = arith.mulf %143, %142 : vector<16x128xf32>
    %145 = arith.mulf %132, %144 : vector<16x128xf32>
    %c632 = arith.constant 632 : index
    %c0_70 = arith.constant 0 : index
    %146 = vector.load %arg3[%c632, %c0_70] : memref<960x128xf32, #tpu.memory_space<vmem>>, vector<128x32xf32>
    %cst_71 = arith.constant dense<0.000000e+00> : vector<16x32xf32>
    %147 = tpu.matmul %145, %146, %cst_71 {dimension_numbers = #tpu.dot_dimension_numbers<[1], [0], [0], [1], [0, 0, 1, 1], [], []>} : vector<16x128xf32>, vector<128x32xf32>, vector<16x32xf32> -> vector<16x32xf32>
    %c760 = arith.constant 760 : index
    %c0_72 = arith.constant 0 : index
    %148 = vector.load %arg3[%c760, %c0_72] : memref<960x128xf32, #tpu.memory_space<vmem>>, vector<1x32xf32>
    %149 = vector.broadcast %148 : vector<1x32xf32> to vector<16x32xf32>
    %150 = arith.addf %147, %149 : vector<16x32xf32>
    %151 = arith.addf %127, %150 : vector<16x32xf32>
    %c784 = arith.constant 784 : index
    %c0_73 = arith.constant 0 : index
    %152 = vector.load %arg3[%c784, %c0_73] : memref<960x128xf32, #tpu.memory_space<vmem>>, vector<32x128xf32>
    %cst_74 = arith.constant dense<0.000000e+00> : vector<16x128xf32>
    %153 = tpu.matmul %151, %152, %cst_74 {dimension_numbers = #tpu.dot_dimension_numbers<[1], [0], [0], [1], [0, 0, 1, 1], [], []>} : vector<16x32xf32>, vector<32x128xf32>, vector<16x128xf32> -> vector<16x128xf32>
    %c816 = arith.constant 816 : index
    %c0_75 = arith.constant 0 : index
    %154 = vector.load %arg3[%c816, %c0_75] : memref<960x128xf32, #tpu.memory_space<vmem>>, vector<1x128xf32>
    %155 = vector.broadcast %154 : vector<1x128xf32> to vector<16x128xf32>
    %156 = arith.addf %153, %155 : vector<16x128xf32>
    %157 = arith.mulf %156, %156 : vector<16x128xf32>
    %158 = arith.mulf %156, %157 : vector<16x128xf32>
    %cst_76 = arith.constant 4.471500e-02 : f32
    %159 = vector.broadcast %cst_76 : f32 to vector<16x128xf32>
    %160 = arith.mulf %159, %158 : vector<16x128xf32>
    %161 = arith.addf %156, %160 : vector<16x128xf32>
    %cst_77 = arith.constant 0.797884583 : f32
    %162 = vector.broadcast %cst_77 : f32 to vector<16x128xf32>
    %163 = arith.mulf %162, %161 : vector<16x128xf32>
    %164 = math.tanh %163 : vector<16x128xf32>
    %cst_78 = arith.constant 1.000000e+00 : f32
    %165 = vector.broadcast %cst_78 : f32 to vector<16x128xf32>
    %166 = arith.addf %165, %164 : vector<16x128xf32>
    %cst_79 = arith.constant 5.000000e-01 : f32
    %167 = vector.broadcast %cst_79 : f32 to vector<16x128xf32>
    %168 = arith.mulf %167, %166 : vector<16x128xf32>
    %169 = arith.mulf %156, %168 : vector<16x128xf32>
    %c824 = arith.constant 824 : index
    %c0_80 = arith.constant 0 : index
    %170 = vector.load %arg3[%c824, %c0_80] : memref<960x128xf32, #tpu.memory_space<vmem>>, vector<128x4xf32>
    %cst_81 = arith.constant dense<0.000000e+00> : vector<16x4xf32>
    %171 = tpu.matmul %169, %170, %cst_81 {dimension_numbers = #tpu.dot_dimension_numbers<[1], [0], [0], [1], [0, 0, 1, 1], [], []>} : vector<16x128xf32>, vector<128x4xf32>, vector<16x4xf32> -> vector<16x4xf32>
    %c952 = arith.constant 952 : index
    %c0_82 = arith.constant 0 : index
    %172 = vector.load %arg3[%c952, %c0_82] : memref<960x128xf32, #tpu.memory_space<vmem>>, vector<1x4xf32>
    %173 = vector.broadcast %172 : vector<1x4xf32> to vector<16x4xf32>
    %174 = arith.addf %171, %173 : vector<16x4xf32>
    %c0_83 = arith.constant 0 : index
    %c0_84 = arith.constant 0 : index
    %175 = vector.load %arg4[%c0_83, %c0_84] : memref<16x4xf32, #tpu.memory_space<vmem>>, vector<16x4xf32>
    tpu.vector_store %arg4[%c0_83, %c0_84], %174 {strides = array<i32>} : memref<16x4xf32, #tpu.memory_space<vmem>>, vector<16x4xf32>,
    return
  }
}

</mosaic_0001>

<llo_original>
// kernel: _lambda_.1
$region0: #{_lambda_.1}
  #allocation0 [shape = 'u32[]', space=smem, size = 0x4, offset = 0x4, fixed_abs, tag = 'smem constant byte address 0x4 - core index']
  #allocation1 [shape = 'u32[144,128]{1,0:T(1,128)}', space=vmem, size = 0x12000, scoped, tag = 'internal scratch']
  %s0 = inlined_call_operand.vmem [shape: f32[2,32], index: 0, kind: input, shape index: {}]
  %s1 = inlined_call_operand.vmem [shape: f32[8,8], index: 1, kind: input, shape index: {}]
  %s2 = inlined_call_operand.vmem [shape: f32[22,4], index: 2, kind: input, shape index: {}]
  %s3 = inlined_call_operand.vmem [shape: f32[960,128], index: 3, kind: input, shape index: {}]
  %s4 = inlined_call_operand.vmem [shape: f32[16,4], index: 4, kind: output, shape index: {}]
  %s5 = sld [smem:[#allocation0]]
  $region26: #{_lambda_.1} parent=0
    _
  %s7 = ssub.s32 1, %s5
  %s8 = scalar_select 0, %s7, %s5
  // Predicated region
  $region2: #{_lambda_.1} parent=0 // pred_check
    _
  $region3: #{_lambda_.1} parent=0 // pred_check_branch
    %10 = sbr.rel (0) target = $region5
  $region4: #{_lambda_.1} parent=0 // pred_region
    _
  $region5: #{_lambda_.1} parent=0 // pred_fallthru
    _
  // Predicated region
  $region6: #{_lambda_.1} parent=0 // pred_check
    _
  $region7: #{_lambda_.1} parent=0 // pred_check_branch
    %12 = sbr.rel (0) target = $region9
  $region8: #{_lambda_.1} parent=0 // pred_region
    _
  $region9: #{_lambda_.1} parent=0 // pred_fallthru
    _
  // Predicated region
  $region10: #{_lambda_.1} parent=0 // pred_check
    _
  $region11: #{_lambda_.1} parent=0 // pred_check_branch
    %14 = sbr.rel (0) target = $region13
  $region12: #{_lambda_.1} parent=0 // pred_region
    _
  $region13: #{_lambda_.1} parent=0 // pred_fallthru
    _
  // Predicated region
  $region14: #{_lambda_.1} parent=0 // pred_check
    _
  $region15: #{_lambda_.1} parent=0 // pred_check_branch
    %16 = sbr.rel (0) target = $region17
  $region16: #{_lambda_.1} parent=0 // pred_region
    _
  $region17: #{_lambda_.1} parent=0 // pred_fallthru
    _
  %v17 = vld [vmem:[%s0] sm:$0x3]
  %v18 = vld [vmem:[%s3] sm:$0xff]
  %v19 = vld [vmem:[%s3 + $0x8] sm:$0xff]
  %v20 = vld [vmem:[%s3 + $0x10] sm:$0xff]
  %v21 = vld [vmem:[%s3 + $0x18] sm:$0xff]
  %v22 = vld [vmem:[%s3 + $0x20] sm:$0x1]
  %v23 = vlaneseq
  %v24 = vshrl.u32 %v23, 7
  %v25 = vsub.s32 0, %v24
  %v26 = vrot.slane %v22, %v25
  %vm27 = vcmask 261120
  %v29 = vsel %vm27, %v17, 0
  %31 = vmatprep.subr.mxu0 0.0
  %32 = vmatpush1.msra.mxu0 0.0
  %33 = vmatprep.subr.mxu0 0.0
  %34 = vmatpush1.msra.mxu0 0.0
  %35 = vmatprep.subr.mxu0 0.0
  %36 = vmatpush1.msra.mxu0 0.0
  %37 = vmatprep.subr.mxu0 0.0
  %38 = vmatpush1.msra.mxu0 0.0
  %39 = vmatprep.subr.mxu0 0.0
  %40 = vmatpush1.msra.mxu0 0.0
  %41 = vmatprep.subr.mxu0 0.0
  %42 = vmatpush1.msra.mxu0 0.0
  %43 = vmatprep.subr.mxu0 0.0
  %44 = vmatpush1.msra.mxu0 0.0
  %45 = vmatprep.subr.mxu0 0.0
  %46 = vmatpush1.msra.mxu0 0.0
  %47 = vmatprep.subr.mxu0 0.0
  %48 = vmatpush1.msra.mxu0 0.0
  %49 = vmatprep.subr.mxu0 0.0
  %50 = vmatpush1.msra.mxu0 0.0
  %51 = vmatprep.subr.mxu0 0.0
  %52 = vmatpush1.msra.mxu0 0.0
  %53 = vmatprep.subr.mxu0 0.0
  %54 = vmatpush1.msra.mxu0 0.0
  %55 = vmatprep.subr.mxu0 0.0
  %56 = vmatpush1.msra.mxu0 %v21
  %57 = vmatprep.subr.mxu0 0.0
  %58 = vmatpush1.msra.mxu0 %v20
  %59 = vmatprep.subr.mxu0 0.0
  %60 = vmatpush1.msra.mxu0 %v19
  %61 = vmatprep.subr.mxu0 0.0
  %62 = vmatpush1.msra.mxu0 %v18
  %63 = vmatprep.subr.mxu0 0.0
  %64 = vmatpush2.msra.mxu0 0.0
  %65 = vmatprep.subr.mxu0 0.0
  %66 = vmatpush2.msra.mxu0 0.0
  %67 = vmatprep.subr.mxu0 0.0
  %68 = vmatpush2.msra.mxu0 0.0
  %69 = vmatprep.subr.mxu0 0.0
  %70 = vmatpush2.msra.mxu0 0.0
  %71 = vmatprep.subr.mxu0 0.0
  %72 = vmatpush2.msra.mxu0 0.0
  %73 = vmatprep.subr.mxu0 0.0
  %74 = vmatpush2.msra.mxu0 0.0
  %75 = vmatprep.subr.mxu0 0.0
  %76 = vmatpush2.msra.mxu0 0.0
  %77 = vmatprep.subr.mxu0 0.0
  %78 = vmatpush2.msra.mxu0 0.0
  %79 = vmatprep.subr.mxu0 0.0
  %80 = vmatpush2.msra.mxu0 0.0
  %81 = vmatprep.subr.mxu0 0.0
  %82 = vmatpush2.msra.mxu0 0.0
  %83 = vmatprep.subr.mxu0 0.0
  %84 = vmatpush2.msra.mxu0 0.0
  %85 = vmatprep.subr.mxu0 0.0
  %86 = vmatpush2.msra.mxu0 0.0
  %87 = vmatprep.subr.mxu0 0.0
  %88 = vmatpush2.msra.mxu0 0.0
  %89 = vmatprep.subr.mxu0 0.0
  %90 = vmatpush2.msra.mxu0 0.0
  %91 = vmatprep.subr.mxu0 0.0
  %92 = vmatpush2.msra.mxu0 0.0
  %93 = vmatprep.subr.mxu0 0.0
  %94 = vmatpush2.msra.mxu0 0.0
  %95 = vmatprep.mubr.f32.mxu0 0.0
  %96 = vmatmul.mubr.f32.gmra.mxu0 %v29
  %v97 = vpop.f32.mrf.mxu0
  %v98 = vadd.f32 %v26, %v97
  %v99 = vpop.f32.mrf.mxu0
  %100 = vdwg.mxu0
  %v101 = vmax.f32 %v98, 0.0
  %v102 = vand.u32 2147483647, %v98
  %v103 = vsub.f32 0.0, %v102
  %v104 = vmul.f32 %v103, 1.442695
  %v105 = vpow.pop %v104
  %v106 = vadd.f32 %v105, 1.0
  %v107 = vlog2.pop %v106
  %v108 = vmul.f32 %v107, 0.6931472
  %v109 = vadd.f32 %v101, %v108
  %v110 = vtanh.pop %v109
  %v111 = vmul.f32 %v98, %v110
  %v112 = vld [vmem:[%s3 + $0x28] sm:$0xff]
  %v113 = vld [vmem:[%s3 + $0x30] sm:$0xff]
  %v114 = vld [vmem:[%s3 + $0x38] sm:$0xff]
  %v115 = vld [vmem:[%s3 + $0x40] sm:$0xff]
  %v116 = vld [vmem:[%s3 + $0x48] sm:$0xff]
  %v117 = vld [vmem:[%s3 + $0x50] sm:$0xff]
  %v118 = vld [vmem:[%s3 + $0x58] sm:$0xff]
  %v119 = vld [vmem:[%s3 + $0x60] sm:$0xff]
  %v120 = vld [vmem:[%s3 + $0x68] sm:$0x1]
  %v121 = vlaneseq
  %v122 = vshrl.u32 %v121, 7
  %v123 = vsub.s32 0, %v122
  %v124 = vrot.slane %v120, %v123
  %vm125 = vcmask 523264
  %v127 = vsel %vm125, %v111, 0
  %129 = vmatprep.subr.mxu0 0.0
  %130 = vmatpush1.msra.mxu0 0.0
  %131 = vmatprep.subr.mxu0 0.0
  %132 = vmatpush1.msra.mxu0 0.0
  %133 = vmatprep.subr.mxu0 0.0
  %134 = vmatpush1.msra.mxu0 0.0
  %135 = vmatprep.subr.mxu0 0.0
  %136 = vmatpush1.msra.mxu0 0.0
  %137 = vmatprep.subr.mxu0 0.0
  %138 = vmatpush1.msra.mxu0 0.0
  %139 = vmatprep.subr.mxu0 0.0
  %140 = vmatpush1.msra.mxu0 0.0
  %141 = vmatprep.subr.mxu0 0.0
  %142 = vmatpush1.msra.mxu0 0.0
  %143 = vmatprep.subr.mxu0 0.0
  %144 = vmatpush1.msra.mxu0 0.0
  %145 = vmatprep.subr.mxu0 0.0
  %146 = vmatpush1.msra.mxu0 %v119
  %147 = vmatprep.subr.mxu0 0.0
  %148 = vmatpush1.msra.mxu0 %v118
  %149 = vmatprep.subr.mxu0 0.0
  %150 = vmatpush1.msra.mxu0 %v117
  %151 = vmatprep.subr.mxu0 0.0
  %152 = vmatpush1.msra.mxu0 %v116
  %153 = vmatprep.subr.mxu0 0.0
  %154 = vmatpush1.msra.mxu0 %v115
  %155 = vmatprep.subr.mxu0 0.0
  %156 = vmatpush1.msra.mxu0 %v114
  %157 = vmatprep.subr.mxu0 0.0
  %158 = vmatpush1.msra.mxu0 %v113
  %159 = vmatprep.subr.mxu0 0.0
  %160 = vmatpush1.msra.mxu0 %v112
  %161 = vmatprep.subr.mxu0 0.0
  %162 = vmatpush2.msra.mxu0 0.0
  %163 = vmatprep.subr.mxu0 0.0
  %164 = vmatpush2.msra.mxu0 0.0
  %165 = vmatprep.subr.mxu0 0.0
  %166 = vmatpush2.msra.mxu0 0.0
  %167 = vmatprep.subr.mxu0 0.0
  %168 = vmatpush2.msra.mxu0 0.0
  %169 = vmatprep.subr.mxu0 0.0
  %170 = vmatpush2.msra.mxu0 0.0
  %171 = vmatprep.subr.mxu0 0.0
  %172 = vmatpush2.msra.mxu0 0.0
  %173 = vmatprep.subr.mxu0 0.0
  %174 = vmatpush2.msra.mxu0 0.0
  %175 = vmatprep.subr.mxu0 0.0
  %176 = vmatpush2.msra.mxu0 0.0
  %177 = vmatprep.subr.mxu0 0.0
  %178 = vmatpush2.msra.mxu0 0.0
  %179 = vmatprep.subr.mxu0 0.0
  %180 = vmatpush2.msra.mxu0 0.0
  %181 = vmatprep.subr.mxu0 0.0
  %182 = vmatpush2.msra.mxu0 0.0
  %183 = vmatprep.subr.mxu0 0.0
  %184 = vmatpush2.msra.mxu0 0.0
  %185 = vmatprep.subr.mxu0 0.0
  %186 = vmatpush2.msra.mxu0 0.0
  %187 = vmatprep.subr.mxu0 0.0
  %188 = vmatpush2.msra.mxu0 0.0
  %189 = vmatprep.subr.mxu0 0.0
  %190 = vmatpush2.msra.mxu0 0.0
  %191 = vmatprep.subr.mxu0 0.0
  %192 = vmatpush2.msra.mxu0 0.0
  %193 = vmatprep.mubr.f32.mxu0 0.0
  %194 = vmatmul.mubr.f32.gmra.mxu0 %v127
  %v195 = vpop.f32.mrf.mxu0
  %v196 = vadd.f32 %v124, %v195
  %v197 = vpop.f32.mrf.mxu0
  %198 = vdwg.mxu0
  %v199 = vld [vmem:[%s1] sm:$0xff]
  %v200 = vld [vmem:[%s3 + $0x70] sm:$0xff]
  %v201 = vld [vmem:[%s3 + $0x78] sm:$0xff]
  %vm202 = vcmask 64512
  %v204 = vsel %vm202, %v199, 0
  %206 = vmatprep.subr.mxu0 0.0
  %207 = vmatpush1.msra.mxu0 0.0
  %208 = vmatprep.subr.mxu0 0.0
  %209 = vmatpush1.msra.mxu0 0.0
  %210 = vmatprep.subr.mxu0 0.0
  %211 = vmatpush1.msra.mxu0 0.0
  %212 = vmatprep.subr.mxu0 0.0
  %213 = vmatpush1.msra.mxu0 0.0
  %214 = vmatprep.subr.mxu0 0.0
  %215 = vmatpush1.msra.mxu0 0.0
  %216 = vmatprep.subr.mxu0 0.0
  %217 = vmatpush1.msra.mxu0 0.0
  %218 = vmatprep.subr.mxu0 0.0
  %219 = vmatpush1.msra.mxu0 0.0
  %220 = vmatprep.subr.mxu0 0.0
  %221 = vmatpush1.msra.mxu0 0.0
  %222 = vmatprep.subr.mxu0 0.0
  %223 = vmatpush1.msra.mxu0 0.0
  %224 = vmatprep.subr.mxu0 0.0
  %225 = vmatpush1.msra.mxu0 0.0
  %226 = vmatprep.subr.mxu0 0.0
  %227 = vmatpush1.msra.mxu0 0.0
  %228 = vmatprep.subr.mxu0 0.0
  %229 = vmatpush1.msra.mxu0 0.0
  %230 = vmatprep.subr.mxu0 0.0
  %231 = vmatpush1.msra.mxu0 0.0
  %232 = vmatprep.subr.mxu0 0.0
  %233 = vmatpush1.msra.mxu0 0.0
  %234 = vmatprep.subr.mxu0 0.0
  %235 = vmatpush1.msra.mxu0 0.0
  %236 = vmatprep.subr.mxu0 0.0
  %237 = vmatpush1.msra.mxu0 %v200
  %238 = vmatprep.subr.mxu0 0.0
  %239 = vmatpush2.msra.mxu0 0.0
  %240 = vmatprep.subr.mxu0 0.0
  %241 = vmatpush2.msra.mxu0 0.0
  %242 = vmatprep.subr.mxu0 0.0
  %243 = vmatpush2.msra.mxu0 0.0
  %244 = vmatprep.subr.mxu0 0.0
  %245 = vmatpush2.msra.mxu0 0.0
  %246 = vmatprep.subr.mxu0 0.0
  %247 = vmatpush2.msra.mxu0 0.0
  %248 = vmatprep.subr.mxu0 0.0
  %249 = vmatpush2.msra.mxu0 0.0
  %250 = vmatprep.subr.mxu0 0.0
  %251 = vmatpush2.msra.mxu0 0.0
  %252 = vmatprep.subr.mxu0 0.0
  %253 = vmatpush2.msra.mxu0 0.0
  %254 = vmatprep.subr.mxu0 0.0
  %255 = vmatpush2.msra.mxu0 0.0
  %256 = vmatprep.subr.mxu0 0.0
  %257 = vmatpush2.msra.mxu0 0.0
  %258 = vmatprep.subr.mxu0 0.0
  %259 = vmatpush2.msra.mxu0 0.0
  %260 = vmatprep.subr.mxu0 0.0
  %261 = vmatpush2.msra.mxu0 0.0
  %262 = vmatprep.subr.mxu0 0.0
  %263 = vmatpush2.msra.mxu0 0.0
  %264 = vmatprep.subr.mxu0 0.0
  %265 = vmatpush2.msra.mxu0 0.0
  %266 = vmatprep.subr.mxu0 0.0
  %267 = vmatpush2.msra.mxu0 0.0
  %268 = vmatprep.subr.mxu0 0.0
  %269 = vmatpush2.msra.mxu0 0.0
  %270 = vmatprep.mubr.f32.mxu0 0.0
  %271 = vmatmul.mubr.f32.gmra.mxu0 %v204
  %v272 = vpop.f32.mrf.mxu0
  %v273 = vadd.f32 %v201, %v272
  %v274 = vpop.f32.mrf.mxu0
  %275 = vdwg.mxu0
  %v276 = vld [vmem:[%s2] sm:$0xff]
  %v277 = vld [vmem:[%s2 + $0x8] sm:$0xff]
  %v278 = vld [vmem:[%s2 + $0x10] sm:$0x3f]
  %v279 = vld [vmem:[%s3 + $0x80] sm:$0xf]
  %v280 = vld [vmem:[%s3 + $0x88] sm:$0xff]
  %v281 = vld [vmem:[%s3 + $0x90] sm:$0xff]
  %v282 = vld [vmem:[%s3 + $0x98] sm:$0x3f]
  %vm283 = vcmask 31744
  %v285 = vsel %vm283, %v276, 0
  %v288 = vsel %vm283, %v277, 0
  %v291 = vsel %vm283, %v278, 0
  %vm293 = vcmask 1043456
  %v295 = vsel %vm293, %v279, 0
  %297 = vmatprep.subr.mxu0 0.0
  %298 = vmatpush1.msra.mxu0 0.0
  %299 = vmatprep.subr.mxu0 0.0
  %300 = vmatpush1.msra.mxu0 0.0
  %301 = vmatprep.subr.mxu0 0.0
  %302 = vmatpush1.msra.mxu0 0.0
  %303 = vmatprep.subr.mxu0 0.0
  %304 = vmatpush1.msra.mxu0 0.0
  %305 = vmatprep.subr.mxu0 0.0
  %306 = vmatpush1.msra.mxu0 0.0
  %307 = vmatprep.subr.mxu0 0.0
  %308 = vmatpush1.msra.mxu0 0.0
  %309 = vmatprep.subr.mxu0 0.0
  %310 = vmatpush1.msra.mxu0 0.0
  %311 = vmatprep.subr.mxu0 0.0
  %312 = vmatpush1.msra.mxu0 0.0
  %313 = vmatprep.subr.mxu0 0.0
  %314 = vmatpush1.msra.mxu0 0.0
  %315 = vmatprep.subr.mxu0 0.0
  %316 = vmatpush1.msra.mxu0 0.0
  %317 = vmatprep.subr.mxu0 0.0
  %318 = vmatpush1.msra.mxu0 0.0
  %319 = vmatprep.subr.mxu0 0.0
  %320 = vmatpush1.msra.mxu0 0.0
  %321 = vmatprep.subr.mxu0 0.0
  %322 = vmatpush1.msra.mxu0 0.0
  %323 = vmatprep.subr.mxu0 0.0
  %324 = vmatpush1.msra.mxu0 0.0
  %325 = vmatprep.subr.mxu0 0.0
  %326 = vmatpush1.msra.mxu0 0.0
  %327 = vmatprep.subr.mxu0 0.0
  %328 = vmatpush1.msra.mxu0 %v295
  %329 = vmatprep.subr.mxu0 0.0
  %330 = vmatpush2.msra.mxu0 0.0
  %331 = vmatprep.subr.mxu0 0.0
  %332 = vmatpush2.msra.mxu0 0.0
  %333 = vmatprep.subr.mxu0 0.0
  %334 = vmatpush2.msra.mxu0 0.0
  %335 = vmatprep.subr.mxu0 0.0
  %336 = vmatpush2.msra.mxu0 0.0
  %337 = vmatprep.subr.mxu0 0.0
  %338 = vmatpush2.msra.mxu0 0.0
  %339 = vmatprep.subr.mxu0 0.0
  %340 = vmatpush2.msra.mxu0 0.0
  %341 = vmatprep.subr.mxu0 0.0
  %342 = vmatpush2.msra.mxu0 0.0
  %343 = vmatprep.subr.mxu0 0.0
  %344 = vmatpush2.msra.mxu0 0.0
  %345 = vmatprep.subr.mxu0 0.0
  %346 = vmatpush2.msra.mxu0 0.0
  %347 = vmatprep.subr.mxu0 0.0
  %348 = vmatpush2.msra.mxu0 0.0
  %349 = vmatprep.subr.mxu0 0.0
  %350 = vmatpush2.msra.mxu0 0.0
  %351 = vmatprep.subr.mxu0 0.0
  %352 = vmatpush2.msra.mxu0 0.0
  %353 = vmatprep.subr.mxu0 0.0
  %354 = vmatpush2.msra.mxu0 0.0
  %355 = vmatprep.subr.mxu0 0.0
  %356 = vmatpush2.msra.mxu0 0.0
  %357 = vmatprep.subr.mxu0 0.0
  %358 = vmatpush2.msra.mxu0 0.0
  %359 = vmatprep.subr.mxu0 0.0
  %360 = vmatpush2.msra.mxu0 0.0
  %361 = vmatprep.mubr.f32.mxu0 0.0
  %362 = vmatmul.mubr.f32.gmra.mxu0 %v285
  %v363 = vpop.f32.mrf.mxu0
  %v364 = vadd.f32 %v280, %v363
  %v365 = vpop.f32.mrf.mxu0
  %366 = vmatprep.mubr.f32.mxu0 0.0
  %367 = vmatmul.mubr.f32.gmra.mxu0 %v288
  %v368 = vpop.f32.mrf.mxu0
  %v369 = vadd.f32 %v281, %v368
  %v370 = vpop.f32.mrf.mxu0
  %371 = vmatprep.mubr.f32.mxu0 0.0
  %372 = vmatmul.mubr.f32.gmra.mxu0 %v291
  %v373 = vpop.f32.mrf.mxu0
  %v374 = vadd.f32 %v282, %v373
  %v375 = vpop.f32.mrf.mxu0
  %376 = vdwg.mxu0
  %v378 = vrot.slane %v273, 6
  %vm383 = vcmask 1041408
  %v384 = vrot.slane %v364, 6
  %v385 = vrot.slane %v369, 6
  %v386 = vsel %vm383, %v384, %v385
  %v387 = vrot.slane %v374, 6
  %v388 = vsel %vm383, %v385, %v387
  %v392 = vsel %vm383, %v196, %v378
  %v393 = vsel %vm383, %v378, %v384
  %v394 = vld [vmem:[%s3 + $0xa0] sm:$0xff]
  %v395 = vld [vmem:[%s3 + $0xa8] sm:$0xff]
  %v397 = vsel %vm27, %v394, 0
  %v400 = vsel %vm27, %v395, 0
  %402 = vmatprep.subr.mxu0 0.0
  %403 = vmatpush1.msra.mxu0 0.0
  %404 = vmatprep.subr.mxu0 0.0
  %405 = vmatpush1.msra.mxu0 0.0
  %406 = vmatprep.subr.mxu0 0.0
  %407 = vmatpush1.msra.mxu0 0.0
  %408 = vmatprep.subr.mxu0 0.0
  %409 = vmatpush1.msra.mxu0 0.0
  %410 = vmatprep.subr.mxu0 0.0
  %411 = vmatpush1.msra.mxu0 0.0
  %412 = vmatprep.subr.mxu0 0.0
  %413 = vmatpush1.msra.mxu0 0.0
  %414 = vmatprep.subr.mxu0 0.0
  %415 = vmatpush1.msra.mxu0 0.0
  %416 = vmatprep.subr.mxu0 0.0
  %417 = vmatpush1.msra.mxu0 0.0
  %418 = vmatprep.subr.mxu0 0.0
  %419 = vmatpush1.msra.mxu0 0.0
  %420 = vmatprep.subr.mxu0 0.0
  %421 = vmatpush1.msra.mxu0 0.0
  %422 = vmatprep.subr.mxu0 0.0
  %423 = vmatpush1.msra.mxu0 0.0
  %424 = vmatprep.subr.mxu0 0.0
  %425 = vmatpush1.msra.mxu0 0.0
  %426 = vmatprep.subr.mxu0 0.0
  %427 = vmatpush1.msra.mxu0 %v388
  %428 = vmatprep.subr.mxu0 0.0
  %429 = vmatpush1.msra.mxu0 %v386
  %430 = vmatprep.subr.mxu0 0.0
  %431 = vmatpush1.msra.mxu0 %v393
  %432 = vmatprep.subr.mxu0 0.0
  %433 = vmatpush1.msra.mxu0 %v392
  %434 = vmatprep.subr.mxu0 0.0
  %435 = vmatpush2.msra.mxu0 0.0
  %436 = vmatprep.subr.mxu0 0.0
  %437 = vmatpush2.msra.mxu0 0.0
  %438 = vmatprep.subr.mxu0 0.0
  %439 = vmatpush2.msra.mxu0 0.0
  %440 = vmatprep.subr.mxu0 0.0
  %441 = vmatpush2.msra.mxu0 0.0
  %442 = vmatprep.subr.mxu0 0.0
  %443 = vmatpush2.msra.mxu0 0.0
  %444 = vmatprep.subr.mxu0 0.0
  %445 = vmatpush2.msra.mxu0 0.0
  %446 = vmatprep.subr.mxu0 0.0
  %447 = vmatpush2.msra.mxu0 0.0
  %448 = vmatprep.subr.mxu0 0.0
  %449 = vmatpush2.msra.mxu0 0.0
  %450 = vmatprep.subr.mxu0 0.0
  %451 = vmatpush2.msra.mxu0 0.0
  %452 = vmatprep.subr.mxu0 0.0
  %453 = vmatpush2.msra.mxu0 0.0
  %454 = vmatprep.subr.mxu0 0.0
  %455 = vmatpush2.msra.mxu0 0.0
  %456 = vmatprep.subr.mxu0 0.0
  %457 = vmatpush2.msra.mxu0 0.0
  %458 = vmatprep.subr.mxu0 0.0
  %459 = vmatpush2.msra.mxu0 0.0
  %460 = vmatprep.subr.mxu0 0.0
  %461 = vmatpush2.msra.mxu0 0.0
  %462 = vmatprep.subr.mxu0 0.0
  %463 = vmatpush2.msra.mxu0 0.0
  %464 = vmatprep.subr.mxu0 0.0
  %465 = vmatpush2.msra.mxu0 0.0
  %466 = vmatprep.mubr.f32.mxu0 0.0
  %467 = vmatmul.mubr.f32.gmra.mxu0 %v397
  %v468 = vpop.f32.mrf.mxu0
  %v469 = vadd.f32 0.0, %v468
  %v470 = vpop.f32.mrf.mxu0
  %471 = vmatprep.mubr.f32.mxu0 0.0
  %472 = vmatmul.mubr.f32.gmra.mxu0 %v400
  %v473 = vpop.f32.mrf.mxu0
  %v474 = vadd.f32 0.0, %v473
  %v475 = vpop.f32.mrf.mxu0
  %476 = vdwg.mxu0
  %v477 = vld [vmem:[%s3 + $0xb0] sm:$0xff]
  %v478 = vld [vmem:[%s3 + $0xb8] sm:$0xff]
  %v480 = vsel %vm27, %v477, 0
  %v483 = vsel %vm27, %v478, 0
  %485 = vmatprep.subr.mxu0 0.0
  %486 = vmatpush1.msra.mxu0 0.0
  %487 = vmatprep.subr.mxu0 0.0
  %488 = vmatpush1.msra.mxu0 0.0
  %489 = vmatprep.subr.mxu0 0.0
  %490 = vmatpush1.msra.mxu0 0.0
  %491 = vmatprep.subr.mxu0 0.0
  %492 = vmatpush1.msra.mxu0 0.0
  %493 = vmatprep.subr.mxu0 0.0
  %494 = vmatpush1.msra.mxu0 0.0
  %495 = vmatprep.subr.mxu0 0.0
  %496 = vmatpush1.msra.mxu0 0.0
  %497 = vmatprep.subr.mxu0 0.0
  %498 = vmatpush1.msra.mxu0 0.0
  %499 = vmatprep.subr.mxu0 0.0
  %500 = vmatpush1.msra.mxu0 0.0
  %501 = vmatprep.subr.mxu0 0.0
  %502 = vmatpush1.msra.mxu0 0.0
  %503 = vmatprep.subr.mxu0 0.0
  %504 = vmatpush1.msra.mxu0 0.0
  %505 = vmatprep.subr.mxu0 0.0
  %506 = vmatpush1.msra.mxu0 0.0
  %507 = vmatprep.subr.mxu0 0.0
  %508 = vmatpush1.msra.mxu0 0.0
  %509 = vmatprep.subr.mxu0 0.0
  %510 = vmatpush1.msra.mxu0 %v388
  %511 = vmatprep.subr.mxu0 0.0
  %512 = vmatpush1.msra.mxu0 %v386
  %513 = vmatprep.subr.mxu0 0.0
  %514 = vmatpush1.msra.mxu0 %v393
  %515 = vmatprep.subr.mxu0 0.0
  %516 = vmatpush1.msra.mxu0 %v392
  %517 = vmatprep.subr.mxu0 0.0
  %518 = vmatpush2.msra.mxu0 0.0
  %519 = vmatprep.subr.mxu0 0.0
  %520 = vmatpush2.msra.mxu0 0.0
  %521 = vmatprep.subr.mxu0 0.0
  %522 = vmatpush2.msra.mxu0 0.0
  %523 = vmatprep.subr.mxu0 0.0
  %524 = vmatpush2.msra.mxu0 0.0
  %525 = vmatprep.subr.mxu0 0.0
  %526 = vmatpush2.msra.mxu0 0.0
  %527 = vmatprep.subr.mxu0 0.0
  %528 = vmatpush2.msra.mxu0 0.0
  %529 = vmatprep.subr.mxu0 0.0
  %530 = vmatpush2.msra.mxu0 0.0
  %531 = vmatprep.subr.mxu0 0.0
  %532 = vmatpush2.msra.mxu0 0.0
  %533 = vmatprep.subr.mxu0 0.0
  %534 = vmatpush2.msra.mxu0 0.0
  %535 = vmatprep.subr.mxu0 0.0
  %536 = vmatpush2.msra.mxu0 0.0
  %537 = vmatprep.subr.mxu0 0.0
  %538 = vmatpush2.msra.mxu0 0.0
  %539 = vmatprep.subr.mxu0 0.0
  %540 = vmatpush2.msra.mxu0 0.0
  %541 = vmatprep.subr.mxu0 0.0
  %542 = vmatpush2.msra.mxu0 0.0
  %543 = vmatprep.subr.mxu0 0.0
  %544 = vmatpush2.msra.mxu0 0.0
  %545 = vmatprep.subr.mxu0 0.0
  %546 = vmatpush2.msra.mxu0 0.0
  %547 = vmatprep.subr.mxu0 0.0
  %548 = vmatpush2.msra.mxu0 0.0
  %549 = vmatprep.mubr.f32.mxu0 0.0
  %550 = vmatmul.mubr.f32.gmra.mxu0 %v480
  %v551 = vpop.f32.mrf.mxu0
  %v552 = vadd.f32 0.0, %v551
  %v553 = vpop.f32.mrf.mxu0
  %554 = vmatprep.mubr.f32.mxu0 0.0
  %555 = vmatmul.mubr.f32.gmra.mxu0 %v483
  %v556 = vpop.f32.mrf.mxu0
  %v557 = vadd.f32 0.0, %v556
  %v558 = vpop.f32.mrf.mxu0
  %559 = vdwg.mxu0
  %v560 = vld [vmem:[%s3 + $0xc0] sm:$0xff]
  %v561 = vld [vmem:[%s3 + $0xc8] sm:$0xff]
  %v562 = vld [vmem:[%s3 + $0xd0] sm:$0xff]
  %v563 = vld [vmem:[%s3 + $0xd8] sm:$0xff]
  %v564 = vld [vmem:[%s3 + $0xe0] sm:$0x1]
  %v565 = vlaneseq
  %v566 = vshrl.u32 %v565, 7
  %v567 = vsub.s32 0, %v566
  %v568 = vrot.slane %v564, %v567
  %v570 = vsel %vm27, %v469, 0
  %v573 = vsel %vm27, %v474, 0
  %575 = vmatprep.subr.mxu0 0.0
  %576 = vmatpush1.msra.mxu0 0.0
  %577 = vmatprep.subr.mxu0 0.0
  %578 = vmatpush1.msra.mxu0 0.0
  %579 = vmatprep.subr.mxu0 0.0
  %580 = vmatpush1.msra.mxu0 0.0
  %581 = vmatprep.subr.mxu0 0.0
  %582 = vmatpush1.msra.mxu0 0.0
  %583 = vmatprep.subr.mxu0 0.0
  %584 = vmatpush1.msra.mxu0 0.0
  %585 = vmatprep.subr.mxu0 0.0
  %586 = vmatpush1.msra.mxu0 0.0
  %587 = vmatprep.subr.mxu0 0.0
  %588 = vmatpush1.msra.mxu0 0.0
  %589 = vmatprep.subr.mxu0 0.0
  %590 = vmatpush1.msra.mxu0 0.0
  %591 = vmatprep.subr.mxu0 0.0
  %592 = vmatpush1.msra.mxu0 0.0
  %593 = vmatprep.subr.mxu0 0.0
  %594 = vmatpush1.msra.mxu0 0.0
  %595 = vmatprep.subr.mxu0 0.0
  %596 = vmatpush1.msra.mxu0 0.0
  %597 = vmatprep.subr.mxu0 0.0
  %598 = vmatpush1.msra.mxu0 0.0
  %599 = vmatprep.subr.mxu0 0.0
  %600 = vmatpush1.msra.mxu0 %v563
  %601 = vmatprep.subr.mxu0 0.0
  %602 = vmatpush1.msra.mxu0 %v562
  %603 = vmatprep.subr.mxu0 0.0
  %604 = vmatpush1.msra.mxu0 %v561
  %605 = vmatprep.subr.mxu0 0.0
  %606 = vmatpush1.msra.mxu0 %v560
  %607 = vmatprep.subr.mxu0 0.0
  %608 = vmatpush2.msra.mxu0 0.0
  %609 = vmatprep.subr.mxu0 0.0
  %610 = vmatpush2.msra.mxu0 0.0
  %611 = vmatprep.subr.mxu0 0.0
  %612 = vmatpush2.msra.mxu0 0.0
  %613 = vmatprep.subr.mxu0 0.0
  %614 = vmatpush2.msra.mxu0 0.0
  %615 = vmatprep.subr.mxu0 0.0
  %616 = vmatpush2.msra.mxu0 0.0
  %617 = vmatprep.subr.mxu0 0.0
  %618 = vmatpush2.msra.mxu0 0.0
  %619 = vmatprep.subr.mxu0 0.0
  %620 = vmatpush2.msra.mxu0 0.0
  %621 = vmatprep.subr.mxu0 0.0
  %622 = vmatpush2.msra.mxu0 0.0
  %623 = vmatprep.subr.mxu0 0.0
  %624 = vmatpush2.msra.mxu0 0.0
  %625 = vmatprep.subr.mxu0 0.0
  %626 = vmatpush2.msra.mxu0 0.0
  %627 = vmatprep.subr.mxu0 0.0
  %628 = vmatpush2.msra.mxu0 0.0
  %629 = vmatprep.subr.mxu0 0.0
  %630 = vmatpush2.msra.mxu0 0.0
  %631 = vmatprep.subr.mxu0 0.0
  %632 = vmatpush2.msra.mxu0 0.0
  %633 = vmatprep.subr.mxu0 0.0
  %634 = vmatpush2.msra.mxu0 0.0
  %635 = vmatprep.subr.mxu0 0.0
  %636 = vmatpush2.msra.mxu0 0.0
  %637 = vmatprep.subr.mxu0 0.0
  %638 = vmatpush2.msra.mxu0 0.0
  %639 = vmatprep.mubr.f32.mxu0 0.0
  %640 = vmatmul.mubr.f32.gmra.mxu0 %v570
  %v641 = vpop.f32.mrf.mxu0
  %v642 = vadd.f32 %v568, %v641
  %v643 = vpop.f32.mrf.mxu0
  %644 = vmatprep.mubr.f32.mxu0 0.0
  %645 = vmatmul.mubr.f32.gmra.mxu0 %v573
  %v646 = vpop.f32.mrf.mxu0
  %v647 = vadd.f32 %v568, %v646
  %v648 = vpop.f32.mrf.mxu0
  %649 = vdwg.mxu0
  %652 = vrot.lane.b32.xlu0 %v642, 96
  %v653 = vpop.permute.xlu0 %652
  %654 = vrot.lane.b32.xlu0 %v647, 96
  %v655 = vpop.permute.xlu0 %654
  %v656 = vsel %vm27, %v642, 0
  %v658 = vsel %vm27, %v647, 0
  %v660 = vsel %vm27, %v653, 0
  %v662 = vsel %vm27, %v655, 0
  %664 = vmatprep.subr.mxu0 0.0
  %665 = vmatpush1.xpose.msra.mxu0 0.0
  %666 = vmatprep.subr.mxu0 0.0
  %667 = vmatpush1.xpose.msra.mxu0 0.0
  %668 = vmatprep.subr.mxu0 0.0
  %669 = vmatpush1.xpose.msra.mxu0 0.0
  %670 = vmatprep.subr.mxu0 0.0
  %671 = vmatpush1.xpose.msra.mxu0 0.0
  %672 = vmatprep.subr.mxu0 0.0
  %673 = vmatpush1.xpose.msra.mxu0 0.0
  %674 = vmatprep.subr.mxu0 0.0
  %675 = vmatpush1.xpose.msra.mxu0 0.0
  %676 = vmatprep.subr.mxu0 0.0
  %677 = vmatpush1.xpose.msra.mxu0 0.0
  %678 = vmatprep.subr.mxu0 0.0
  %679 = vmatpush1.xpose.msra.mxu0 0.0
  %680 = vmatprep.subr.mxu0 0.0
  %681 = vmatpush1.xpose.msra.mxu0 0.0
  %682 = vmatprep.subr.mxu0 0.0
  %683 = vmatpush1.xpose.msra.mxu0 0.0
  %684 = vmatprep.subr.mxu0 0.0
  %685 = vmatpush1.xpose.msra.mxu0 0.0
  %686 = vmatprep.subr.mxu0 0.0
  %687 = vmatpush1.xpose.msra.mxu0 0.0
  %688 = vmatprep.subr.mxu0 0.0
  %689 = vmatpush1.xpose.msra.mxu0 0.0
  %690 = vmatprep.subr.mxu0 0.0
  %691 = vmatpush1.xpose.msra.mxu0 0.0
  %692 = vmatprep.subr.mxu0 0.0
  %693 = vmatpush1.xpose.msra.mxu0 %v662
  %694 = vmatprep.subr.mxu0 0.0
  %695 = vmatpush1.xpose.msra.mxu0 %v660
  %696 = vmatprep.subr.mxu0 0.0
  %697 = vmatpush2.xpose.msra.mxu0 0.0
  %698 = vmatprep.subr.mxu0 0.0
  %699 = vmatpush2.xpose.msra.mxu0 0.0
  %700 = vmatprep.subr.mxu0 0.0
  %701 = vmatpush2.xpose.msra.mxu0 0.0
  %702 = vmatprep.subr.mxu0 0.0
  %703 = vmatpush2.xpose.msra.mxu0 0.0
  %704 = vmatprep.subr.mxu0 0.0
  %705 = vmatpush2.xpose.msra.mxu0 0.0
  %706 = vmatprep.subr.mxu0 0.0
  %707 = vmatpush2.xpose.msra.mxu0 0.0
  %708 = vmatprep.subr.mxu0 0.0
  %709 = vmatpush2.xpose.msra.mxu0 0.0
  %710 = vmatprep.subr.mxu0 0.0
  %711 = vmatpush2.xpose.msra.mxu0 0.0
  %712 = vmatprep.subr.mxu0 0.0
  %713 = vmatpush2.xpose.msra.mxu0 0.0
  %714 = vmatprep.subr.mxu0 0.0
  %715 = vmatpush2.xpose.msra.mxu0 0.0
  %716 = vmatprep.subr.mxu0 0.0
  %717 = vmatpush2.xpose.msra.mxu0 0.0
  %718 = vmatprep.subr.mxu0 0.0
  %719 = vmatpush2.xpose.msra.mxu0 0.0
  %720 = vmatprep.subr.mxu0 0.0
  %721 = vmatpush2.xpose.msra.mxu0 0.0
  %722 = vmatprep.subr.mxu0 0.0
  %723 = vmatpush2.xpose.msra.mxu0 0.0
  %724 = vmatprep.subr.mxu0 0.0
  %725 = vmatpush2.xpose.msra.mxu0 0.0
  %726 = vmatprep.subr.mxu0 0.0
  %727 = vmatpush2.xpose.msra.mxu0 0.0
  %728 = vmatprep.mubr.f32.mxu0 0.0
  %729 = vmatmul.mubr.f32.gmra.mxu0 %v656
  %v730 = vpop.f32.mrf.mxu0
  %v731 = vadd.f32 0.0, %v730
  %v732 = vpop.f32.mrf.mxu0
  %733 = vmatprep.mubr.f32.mxu0 0.0
  %734 = vmatmul.mubr.f32.gmra.mxu0 %v658
  %v735 = vpop.f32.mrf.mxu0
  %v736 = vadd.f32 0.0, %v735
  %v737 = vpop.f32.mrf.mxu0
  %738 = vdwg.mxu0
  %v739 = vmul.f32 %v731, 0.17677669
  %v740 = vmul.f32 %v736, 0.17677669
  %v741 = vld [vmem:[%s3 + $0x1c0] sm:$0xff]
  %v742 = vld [vmem:[%s3 + $0x1c8] sm:$0xff]
  %v743 = vadd.f32 %v739, %v741
  %v744 = vadd.f32 %v740, %v742
  %vm745 = vcmask 130048
  %v746 = vsel %vm745, %v743, -inf
  %747 = vmax.xlane.f32.xlu0 %v746
  %v748 = vpop.xlane.xlu0 %747
  %v749 = vsel %vm745, %v744, -inf
  %750 = vmax.xlane.f32.xlu0 %v749
  %v751 = vpop.xlane.xlu0 %750
  %v752 = vsub.f32 %v743, %v748
  %v753 = vsub.f32 %v744, %v751
  %v754 = vmul.f32 %v752, 1.442695
  %v755 = vpow.pop %v754
  %v756 = vmul.f32 %v753, 1.442695
  %v757 = vpow.pop %v756
  %v758 = vsel %vm745, %v755, 0.0
  %759 = vadd.xlane.f32.xlu0 %v758
  %v760 = vpop.xlane.xlu0 %759
  %v761 = vsel %vm745, %v757, 0.0
  %762 = vadd.xlane.f32.xlu0 %v761
  %v763 = vpop.xlane.xlu0 %762
  %v764 = vrcp.pop %v760
  %v765 = vrcp.pop %v763
  %v766 = vmul.f32 %v755, %v764
  %v767 = vmul.f32 %v757, %v765
  %768 = vrot.lane.b32.xlu0 %v642, 64
  %v769 = vpop.permute.xlu0 %768
  %770 = vrot.lane.b32.xlu0 %v647, 64
  %v771 = vpop.permute.xlu0 %770
  %v775 = vsel %vm745, %v766, 0
  %v778 = vsel %vm745, %v767, 0
  %780 = vmatprep.subr.mxu0 0.0
  %781 = vmatpush1.msra.mxu0 0.0
  %782 = vmatprep.subr.mxu0 0.0
  %783 = vmatpush1.msra.mxu0 0.0
  %784 = vmatprep.subr.mxu0 0.0
  %785 = vmatpush1.msra.mxu0 0.0
  %786 = vmatprep.subr.mxu0 0.0
  %787 = vmatpush1.msra.mxu0 0.0
  %788 = vmatprep.subr.mxu0 0.0
  %789 = vmatpush1.msra.mxu0 0.0
  %790 = vmatprep.subr.mxu0 0.0
  %791 = vmatpush1.msra.mxu0 0.0
  %792 = vmatprep.subr.mxu0 0.0
  %793 = vmatpush1.msra.mxu0 0.0
  %794 = vmatprep.subr.mxu0 0.0
  %795 = vmatpush1.msra.mxu0 0.0
  %796 = vmatprep.subr.mxu0 0.0
  %797 = vmatpush1.msra.mxu0 0.0
  %798 = vmatprep.subr.mxu0 0.0
  %799 = vmatpush1.msra.mxu0 0.0
  %800 = vmatprep.subr.mxu0 0.0
  %801 = vmatpush1.msra.mxu0 0.0
  %802 = vmatprep.subr.mxu0 0.0
  %803 = vmatpush1.msra.mxu0 0.0
  %804 = vmatprep.subr.mxu0 0.0
  %805 = vmatpush1.msra.mxu0 0.0
  %806 = vmatprep.subr.mxu0 0.0
  %807 = vmatpush1.msra.mxu0 0.0
  %808 = vmatprep.subr.mxu0 0.0
  %809 = vmatpush1.msra.mxu0 %v771
  %810 = vmatprep.subr.mxu0 0.0
  %811 = vmatpush1.msra.mxu0 %v769
  %812 = vmatprep.subr.mxu0 0.0
  %813 = vmatpush2.msra.mxu0 0.0
  %814 = vmatprep.subr.mxu0 0.0
  %815 = vmatpush2.msra.mxu0 0.0
  %816 = vmatprep.subr.mxu0 0.0
  %817 = vmatpush2.msra.mxu0 0.0
  %818 = vmatprep.subr.mxu0 0.0
  %819 = vmatpush2.msra.mxu0 0.0
  %820 = vmatprep.subr.mxu0 0.0
  %821 = vmatpush2.msra.mxu0 0.0
  %822 = vmatprep.subr.mxu0 0.0
  %823 = vmatpush2.msra.mxu0 0.0
  %824 = vmatprep.subr.mxu0 0.0
  %825 = vmatpush2.msra.mxu0 0.0
  %826 = vmatprep.subr.mxu0 0.0
  %827 = vmatpush2.msra.mxu0 0.0
  %828 = vmatprep.subr.mxu0 0.0
  %829 = vmatpush2.msra.mxu0 0.0
  %830 = vmatprep.subr.mxu0 0.0
  %831 = vmatpush2.msra.mxu0 0.0
  %832 = vmatprep.subr.mxu0 0.0
  %833 = vmatpush2.msra.mxu0 0.0
  %834 = vmatprep.subr.mxu0 0.0
  %835 = vmatpush2.msra.mxu0 0.0
  %836 = vmatprep.subr.mxu0 0.0
  %837 = vmatpush2.msra.mxu0 0.0
  %838 = vmatprep.subr.mxu0 0.0
  %839 = vmatpush2.msra.mxu0 0.0
  %840 = vmatprep.subr.mxu0 0.0
  %841 = vmatpush2.msra.mxu0 0.0
  %842 = vmatprep.subr.mxu0 0.0
  %843 = vmatpush2.msra.mxu0 0.0
  %844 = vmatprep.mubr.f32.mxu0 0.0
  %845 = vmatmul.mubr.f32.gmra.mxu0 %v775
  %v846 = vpop.f32.mrf.mxu0
  %v847 = vadd.f32 0.0, %v846
  %v848 = vpop.f32.mrf.mxu0
  %849 = vmatprep.mubr.f32.mxu0 0.0
  %850 = vmatmul.mubr.f32.gmra.mxu0 %v778
  %v851 = vpop.f32.mrf.mxu0
  %v852 = vadd.f32 0.0, %v851
  %v853 = vpop.f32.mrf.mxu0
  %854 = vdwg.mxu0
  %v855 = vld [vmem:[%s3 + $0xe8] sm:$0xff]
  %v856 = vld [vmem:[%s3 + $0xf0] sm:$0xff]
  %v857 = vld [vmem:[%s3 + $0xf8] sm:$0xff]
  %v858 = vld [vmem:[%s3 + $0x100] sm:$0xff]
  %v859 = vld [vmem:[%s3 + $0x108] sm:$0x1]
  %v860 = vlaneseq
  %v861 = vshrl.u32 %v860, 7
  %v862 = vsub.s32 0, %v861
  %v863 = vrot.slane %v859, %v862
  %v865 = vsel %vm27, %v847, 0
  %v868 = vsel %vm27, %v852, 0
  %870 = vmatprep.subr.mxu0 0.0
  %871 = vmatpush1.msra.mxu0 0.0
  %872 = vmatprep.subr.mxu0 0.0
  %873 = vmatpush1.msra.mxu0 0.0
  %874 = vmatprep.subr.mxu0 0.0
  %875 = vmatpush1.msra.mxu0 0.0
  %876 = vmatprep.subr.mxu0 0.0
  %877 = vmatpush1.msra.mxu0 0.0
  %878 = vmatprep.subr.mxu0 0.0
  %879 = vmatpush1.msra.mxu0 0.0
  %880 = vmatprep.subr.mxu0 0.0
  %881 = vmatpush1.msra.mxu0 0.0
  %882 = vmatprep.subr.mxu0 0.0
  %883 = vmatpush1.msra.mxu0 0.0
  %884 = vmatprep.subr.mxu0 0.0
  %885 = vmatpush1.msra.mxu0 0.0
  %886 = vmatprep.subr.mxu0 0.0
  %887 = vmatpush1.msra.mxu0 0.0
  %888 = vmatprep.subr.mxu0 0.0
  %889 = vmatpush1.msra.mxu0 0.0
  %890 = vmatprep.subr.mxu0 0.0
  %891 = vmatpush1.msra.mxu0 0.0
  %892 = vmatprep.subr.mxu0 0.0
  %893 = vmatpush1.msra.mxu0 0.0
  %894 = vmatprep.subr.mxu0 0.0
  %895 = vmatpush1.msra.mxu0 %v858
  %896 = vmatprep.subr.mxu0 0.0
  %897 = vmatpush1.msra.mxu0 %v857
  %898 = vmatprep.subr.mxu0 0.0
  %899 = vmatpush1.msra.mxu0 %v856
  %900 = vmatprep.subr.mxu0 0.0
  %901 = vmatpush1.msra.mxu0 %v855
  %902 = vmatprep.subr.mxu0 0.0
  %903 = vmatpush2.msra.mxu0 0.0
  %904 = vmatprep.subr.mxu0 0.0
  %905 = vmatpush2.msra.mxu0 0.0
  %906 = vmatprep.subr.mxu0 0.0
  %907 = vmatpush2.msra.mxu0 0.0
  %908 = vmatprep.subr.mxu0 0.0
  %909 = vmatpush2.msra.mxu0 0.0
  %910 = vmatprep.subr.mxu0 0.0
  %911 = vmatpush2.msra.mxu0 0.0
  %912 = vmatprep.subr.mxu0 0.0
  %913 = vmatpush2.msra.mxu0 0.0
  %914 = vmatprep.subr.mxu0 0.0
  %915 = vmatpush2.msra.mxu0 0.0
  %916 = vmatprep.subr.mxu0 0.0
  %917 = vmatpush2.msra.mxu0 0.0
  %918 = vmatprep.subr.mxu0 0.0
  %919 = vmatpush2.msra.mxu0 0.0
  %920 = vmatprep.subr.mxu0 0.0
  %921 = vmatpush2.msra.mxu0 0.0
  %922 = vmatprep.subr.mxu0 0.0
  %923 = vmatpush2.msra.mxu0 0.0
  %924 = vmatprep.subr.mxu0 0.0
  %925 = vmatpush2.msra.mxu0 0.0
  %926 = vmatprep.subr.mxu0 0.0
  %927 = vmatpush2.msra.mxu0 0.0
  %928 = vmatprep.subr.mxu0 0.0
  %929 = vmatpush2.msra.mxu0 0.0
  %930 = vmatprep.subr.mxu0 0.0
  %931 = vmatpush2.msra.mxu0 0.0
  %932 = vmatprep.subr.mxu0 0.0
  %933 = vmatpush2.msra.mxu0 0.0
  %934 = vmatprep.mubr.f32.mxu0 0.0
  %935 = vmatmul.mubr.f32.gmra.mxu0 %v865
  %v936 = vpop.f32.mrf.mxu0
  %v937 = vadd.f32 %v863, %v936
  %v938 = vpop.f32.mrf.mxu0
  %939 = vmatprep.mubr.f32.mxu0 0.0
  %940 = vmatmul.mubr.f32.gmra.mxu0 %v868
  %v941 = vpop.f32.mrf.mxu0
  %v942 = vadd.f32 %v863, %v941
  %v943 = vpop.f32.mrf.mxu0
  %944 = vdwg.mxu0
  %v945 = vadd.f32 %v469, %v937
  %v946 = vadd.f32 %v474, %v942
  %v947 = vld [vmem:[%s3 + $0x110] sm:$0xff]
  %v948 = vld [vmem:[%s3 + $0x118] sm:$0xff]
  %v949 = vld [vmem:[%s3 + $0x120] sm:$0xff]
  %v950 = vld [vmem:[%s3 + $0x128] sm:$0xff]
  %v951 = vld [vmem:[%s3 + $0x130] sm:$0x1]
  %v952 = vlaneseq
  %v953 = vshrl.u32 %v952, 7
  %v954 = vsub.s32 0, %v953
  %v955 = vrot.slane %v951, %v954
  %v957 = vsel %vm27, %v945, 0
  %v960 = vsel %vm27, %v946, 0
  %962 = vmatprep.subr.mxu0 0.0
  %963 = vmatpush1.msra.mxu0 0.0
  %964 = vmatprep.subr.mxu0 0.0
  %965 = vmatpush1.msra.mxu0 0.0
  %966 = vmatprep.subr.mxu0 0.0
  %967 = vmatpush1.msra.mxu0 0.0
  %968 = vmatprep.subr.mxu0 0.0
  %969 = vmatpush1.msra.mxu0 0.0
  %970 = vmatprep.subr.mxu0 0.0
  %971 = vmatpush1.msra.mxu0 0.0
  %972 = vmatprep.subr.mxu0 0.0
  %973 = vmatpush1.msra.mxu0 0.0
  %974 = vmatprep.subr.mxu0 0.0
  %975 = vmatpush1.msra.mxu0 0.0
  %976 = vmatprep.subr.mxu0 0.0
  %977 = vmatpush1.msra.mxu0 0.0
  %978 = vmatprep.subr.mxu0 0.0
  %979 = vmatpush1.msra.mxu0 0.0
  %980 = vmatprep.subr.mxu0 0.0
  %981 = vmatpush1.msra.mxu0 0.0
  %982 = vmatprep.subr.mxu0 0.0
  %983 = vmatpush1.msra.mxu0 0.0
  %984 = vmatprep.subr.mxu0 0.0
  %985 = vmatpush1.msra.mxu0 0.0
  %986 = vmatprep.subr.mxu0 0.0
  %987 = vmatpush1.msra.mxu0 %v950
  %988 = vmatprep.subr.mxu0 0.0
  %989 = vmatpush1.msra.mxu0 %v949
  %990 = vmatprep.subr.mxu0 0.0
  %991 = vmatpush1.msra.mxu0 %v948
  %992 = vmatprep.subr.mxu0 0.0
  %993 = vmatpush1.msra.mxu0 %v947
  %994 = vmatprep.subr.mxu0 0.0
  %995 = vmatpush2.msra.mxu0 0.0
  %996 = vmatprep.subr.mxu0 0.0
  %997 = vmatpush2.msra.mxu0 0.0
  %998 = vmatprep.subr.mxu0 0.0
  %999 = vmatpush2.msra.mxu0 0.0
  %1000 = vmatprep.subr.mxu0 0.0
  %1001 = vmatpush2.msra.mxu0 0.0
  %1002 = vmatprep.subr.mxu0 0.0
  %1003 = vmatpush2.msra.mxu0 0.0
  %1004 = vmatprep.subr.mxu0 0.0
  %1005 = vmatpush2.msra.mxu0 0.0
  %1006 = vmatprep.subr.mxu0 0.0
  %1007 = vmatpush2.msra.mxu0 0.0
  %1008 = vmatprep.subr.mxu0 0.0
  %1009 = vmatpush2.msra.mxu0 0.0
  %1010 = vmatprep.subr.mxu0 0.0
  %1011 = vmatpush2.msra.mxu0 0.0
  %1012 = vmatprep.subr.mxu0 0.0
  %1013 = vmatpush2.msra.mxu0 0.0
  %1014 = vmatprep.subr.mxu0 0.0
  %1015 = vmatpush2.msra.mxu0 0.0
  %1016 = vmatprep.subr.mxu0 0.0
  %1017 = vmatpush2.msra.mxu0 0.0
  %1018 = vmatprep.subr.mxu0 0.0
  %1019 = vmatpush2.msra.mxu0 0.0
  %1020 = vmatprep.subr.mxu0 0.0
  %1021 = vmatpush2.msra.mxu0 0.0
  %1022 = vmatprep.subr.mxu0 0.0
  %1023 = vmatpush2.msra.mxu0 0.0
  %1024 = vmatprep.subr.mxu0 0.0
  %1025 = vmatpush2.msra.mxu0 0.0
  %1026 = vmatprep.mubr.f32.mxu0 0.0
  %1027 = vmatmul.mubr.f32.gmra.mxu0 %v957
  %v1028 = vpop.f32.mrf.mxu0
  %v1029 = vadd.f32 %v955, %v1028
  %v1030 = vpop.f32.mrf.mxu0
  %1031 = vmatprep.mubr.f32.mxu0 0.0
  %1032 = vmatmul.mubr.f32.gmra.mxu0 %v960
  %v1033 = vpop.f32.mrf.mxu0
  %v1034 = vadd.f32 %v955, %v1033
  %v1035 = vpop.f32.mrf.mxu0
  %1036 = vdwg.mxu0
  %v1037 = vmul.f32 %v1029, %v1029
  %v1038 = vmul.f32 %v1034, %v1034
  %v1039 = vmul.f32 %v1029, %v1037
  %v1040 = vmul.f32 %v1034, %v1038
  %v1041 = vmul.f32 %v1039, 0.044715
  %v1042 = vmul.f32 %v1040, 0.044715
  %v1043 = vadd.f32 %v1029, %v1041
  %v1044 = vadd.f32 %v1034, %v1042
  %v1045 = vmul.f32 %v1043, 0.7978846
  %v1046 = vmul.f32 %v1044, 0.7978846
  %v1047 = vtanh.pop %v1045
  %v1048 = vtanh.pop %v1046
  %v1049 = vadd.f32 %v1047, 1.0
  %v1050 = vadd.f32 %v1048, 1.0
  %v1051 = vmul.f32 %v1049, 0.5
  %v1052 = vmul.f32 %v1050, 0.5
  %v1053 = vmul.f32 %v1029, %v1051
  %v1054 = vmul.f32 %v1034, %v1052
  %v1055 = vld [vmem:[%s3 + $0x138] sm:$0xff]
  %v1056 = vld [vmem:[%s3 + $0x140] sm:$0xff]
  %v1057 = vld [vmem:[%s3 + $0x148] sm:$0xff]
  %v1058 = vld [vmem:[%s3 + $0x150] sm:$0xff]
  %v1059 = vld [vmem:[%s3 + $0x158] sm:$0xff]
  %v1060 = vld [vmem:[%s3 + $0x160] sm:$0xff]
  %v1061 = vld [vmem:[%s3 + $0x168] sm:$0xff]
  %v1062 = vld [vmem:[%s3 + $0x170] sm:$0xff]
  %v1063 = vld [vmem:[%s3 + $0x178] sm:$0xff]
  %v1064 = vld [vmem:[%s3 + $0x180] sm:$0xff]
  %v1065 = vld [vmem:[%s3 + $0x188] sm:$0xff]
  %v1066 = vld [vmem:[%s3 + $0x190] sm:$0xff]
  %v1067 = vld [vmem:[%s3 + $0x198] sm:$0xff]
  %v1068 = vld [vmem:[%s3 + $0x1a0] sm:$0xff]
  %v1069 = vld [vmem:[%s3 + $0x1a8] sm:$0xff]
  %v1070 = vld [vmem:[%s3 + $0x1b0] sm:$0xff]
  %v1071 = vld [vmem:[%s3 + $0x1b8] sm:$0x1]
  %v1072 = vlaneseq
  %v1073 = vshrl.u32 %v1072, 7
  %v1074 = vsub.s32 0, %v1073
  %v1075 = vrot.slane %v1071, %v1074
  %1076 = vmatprep.subr.mxu0 0.0
  %1077 = vmatpush1.msra.mxu0 %v1070
  %1078 = vmatprep.subr.mxu0 0.0
  %1079 = vmatpush1.msra.mxu0 %v1069
  %1080 = vmatprep.subr.mxu0 0.0
  %1081 = vmatpush1.msra.mxu0 %v1068
  %1082 = vmatprep.subr.mxu0 0.0
  %1083 = vmatpush1.msra.mxu0 %v1067
  %1084 = vmatprep.subr.mxu0 0.0
  %1085 = vmatpush1.msra.mxu0 %v1066
  %1086 = vmatprep.subr.mxu0 0.0
  %1087 = vmatpush1.msra.mxu0 %v1065
  %1088 = vmatprep.subr.mxu0 0.0
  %1089 = vmatpush1.msra.mxu0 %v1064
  %1090 = vmatprep.subr.mxu0 0.0
  %1091 = vmatpush1.msra.mxu0 %v1063
  %1092 = vmatprep.subr.mxu0 0.0
  %1093 = vmatpush1.msra.mxu0 %v1062
  %1094 = vmatprep.subr.mxu0 0.0
  %1095 = vmatpush1.msra.mxu0 %v1061
  %1096 = vmatprep.subr.mxu0 0.0
  %1097 = vmatpush1.msra.mxu0 %v1060
  %1098 = vmatprep.subr.mxu0 0.0
  %1099 = vmatpush1.msra.mxu0 %v1059
  %1100 = vmatprep.subr.mxu0 0.0
  %1101 = vmatpush1.msra.mxu0 %v1058
  %1102 = vmatprep.subr.mxu0 0.0
  %1103 = vmatpush1.msra.mxu0 %v1057
  %1104 = vmatprep.subr.mxu0 0.0
  %1105 = vmatpush1.msra.mxu0 %v1056
  %1106 = vmatprep.subr.mxu0 0.0
  %1107 = vmatpush1.msra.mxu0 %v1055
  %1108 = vmatprep.subr.mxu0 0.0
  %1109 = vmatpush2.msra.mxu0 0.0
  %1110 = vmatprep.subr.mxu0 0.0
  %1111 = vmatpush2.msra.mxu0 0.0
  %1112 = vmatprep.subr.mxu0 0.0
  %1113 = vmatpush2.msra.mxu0 0.0
  %1114 = vmatprep.subr.mxu0 0.0
  %1115 = vmatpush2.msra.mxu0 0.0
  %1116 = vmatprep.subr.mxu0 0.0
  %1117 = vmatpush2.msra.mxu0 0.0
  %1118 = vmatprep.subr.mxu0 0.0
  %1119 = vmatpush2.msra.mxu0 0.0
  %1120 = vmatprep.subr.mxu0 0.0
  %1121 = vmatpush2.msra.mxu0 0.0
  %1122 = vmatprep.subr.mxu0 0.0
  %1123 = vmatpush2.msra.mxu0 0.0
  %1124 = vmatprep.subr.mxu0 0.0
  %1125 = vmatpush2.msra.mxu0 0.0
  %1126 = vmatprep.subr.mxu0 0.0
  %1127 = vmatpush2.msra.mxu0 0.0
  %1128 = vmatprep.subr.mxu0 0.0
  %1129 = vmatpush2.msra.mxu0 0.0
  %1130 = vmatprep.subr.mxu0 0.0
  %1131 = vmatpush2.msra.mxu0 0.0
  %1132 = vmatprep.subr.mxu0 0.0
  %1133 = vmatpush2.msra.mxu0 0.0
  %1134 = vmatprep.subr.mxu0 0.0
  %1135 = vmatpush2.msra.mxu0 0.0
  %1136 = vmatprep.subr.mxu0 0.0
  %1137 = vmatpush2.msra.mxu0 0.0
  %1138 = vmatprep.subr.mxu0 0.0
  %1139 = vmatpush2.msra.mxu0 0.0
  %1140 = vmatprep.mubr.f32.mxu0 0.0
  %1141 = vmatmul.mubr.f32.gmra.mxu0 %v1053
  %v1142 = vpop.f32.mrf.mxu0
  %v1143 = vadd.f32 %v1075, %v1142
  %v1144 = vpop.f32.mrf.mxu0
  %1145 = vmatprep.mubr.f32.mxu0 0.0
  %1146 = vmatmul.mubr.f32.gmra.mxu0 %v1054
  %v1147 = vpop.f32.mrf.mxu0
  %v1148 = vadd.f32 %v1075, %v1147
  %v1149 = vpop.f32.mrf.mxu0
  %1150 = vdwg.mxu0
  %v1151 = vadd.f32 %v945, %v1143
  %v1152 = vadd.f32 %v946, %v1148
  %v1153 = vld [vmem:[%s3 + $0x1d0] sm:$0xf]
  %v1155 = vsel %vm745, %v1153, 0
  %1157 = vmatprep.subr.mxu0 0.0
  %1158 = vmatpush1.msra.mxu0 0.0
  %1159 = vmatprep.subr.mxu0 0.0
  %1160 = vmatpush1.msra.mxu0 0.0
  %1161 = vmatprep.subr.mxu0 0.0
  %1162 = vmatpush1.msra.mxu0 0.0
  %1163 = vmatprep.subr.mxu0 0.0
  %1164 = vmatpush1.msra.mxu0 0.0
  %1165 = vmatprep.subr.mxu0 0.0
  %1166 = vmatpush1.msra.mxu0 0.0
  %1167 = vmatprep.subr.mxu0 0.0
  %1168 = vmatpush1.msra.mxu0 0.0
  %1169 = vmatprep.subr.mxu0 0.0
  %1170 = vmatpush1.msra.mxu0 0.0
  %1171 = vmatprep.subr.mxu0 0.0
  %1172 = vmatpush1.msra.mxu0 0.0
  %1173 = vmatprep.subr.mxu0 0.0
  %1174 = vmatpush1.msra.mxu0 0.0
  %1175 = vmatprep.subr.mxu0 0.0
  %1176 = vmatpush1.msra.mxu0 0.0
  %1177 = vmatprep.subr.mxu0 0.0
  %1178 = vmatpush1.msra.mxu0 0.0
  %1179 = vmatprep.subr.mxu0 0.0
  %1180 = vmatpush1.msra.mxu0 0.0
  %1181 = vmatprep.subr.mxu0 0.0
  %1182 = vmatpush1.msra.mxu0 0.0
  %1183 = vmatprep.subr.mxu0 0.0
  %1184 = vmatpush1.msra.mxu0 0.0
  %1185 = vmatprep.subr.mxu0 0.0
  %1186 = vmatpush1.msra.mxu0 %v1152
  %1187 = vmatprep.subr.mxu0 0.0
  %1188 = vmatpush1.msra.mxu0 %v1151
  %1189 = vmatprep.subr.mxu0 0.0
  %1190 = vmatpush2.msra.mxu0 0.0
  %1191 = vmatprep.subr.mxu0 0.0
  %1192 = vmatpush2.msra.mxu0 0.0
  %1193 = vmatprep.subr.mxu0 0.0
  %1194 = vmatpush2.msra.mxu0 0.0
  %1195 = vmatprep.subr.mxu0 0.0
  %1196 = vmatpush2.msra.mxu0 0.0
  %1197 = vmatprep.subr.mxu0 0.0
  %1198 = vmatpush2.msra.mxu0 0.0
  %1199 = vmatprep.subr.mxu0 0.0
  %1200 = vmatpush2.msra.mxu0 0.0
  %1201 = vmatprep.subr.mxu0 0.0
  %1202 = vmatpush2.msra.mxu0 0.0
  %1203 = vmatprep.subr.mxu0 0.0
  %1204 = vmatpush2.msra.mxu0 0.0
  %1205 = vmatprep.subr.mxu0 0.0
  %1206 = vmatpush2.msra.mxu0 0.0
  %1207 = vmatprep.subr.mxu0 0.0
  %1208 = vmatpush2.msra.mxu0 0.0
  %1209 = vmatprep.subr.mxu0 0.0
  %1210 = vmatpush2.msra.mxu0 0.0
  %1211 = vmatprep.subr.mxu0 0.0
  %1212 = vmatpush2.msra.mxu0 0.0
  %1213 = vmatprep.subr.mxu0 0.0
  %1214 = vmatpush2.msra.mxu0 0.0
  %1215 = vmatprep.subr.mxu0 0.0
  %1216 = vmatpush2.msra.mxu0 0.0
  %1217 = vmatprep.subr.mxu0 0.0
  %1218 = vmatpush2.msra.mxu0 0.0
  %1219 = vmatprep.subr.mxu0 0.0
  %1220 = vmatpush2.msra.mxu0 0.0
  %1221 = vmatprep.mubr.f32.mxu0 0.0
  %1222 = vmatmul.mubr.f32.gmra.mxu0 %v1155
  %v1223 = vpop.f32.mrf.mxu0
  %v1224 = vadd.f32 0.0, %v1223
  %v1225 = vpop.f32.mrf.mxu0
  %1226 = vdwg.mxu0
  %v1227 = vld [vmem:[%s3 + $0x1d8] sm:$0xff]
  %v1228 = vld [vmem:[%s3 + $0x1e0] sm:$0xff]
  %v1229 = vld [vmem:[%s3 + $0x1e8] sm:$0xff]
  %v1230 = vld [vmem:[%s3 + $0x1f0] sm:$0xff]
  %v1231 = vld [vmem:[%s3 + $0x1f8] sm:$0x1]
  %v1232 = vlaneseq
  %v1233 = vshrl.u32 %v1232, 7
  %v1234 = vsub.s32 0, %v1233
  %v1235 = vrot.slane %v1231, %v1234
  %v1237 = vsel %vm27, %v552, 0
  %v1240 = vsel %vm27, %v557, 0
  %1242 = vmatprep.subr.mxu0 0.0
  %1243 = vmatpush1.msra.mxu0 0.0
  %1244 = vmatprep.subr.mxu0 0.0
  %1245 = vmatpush1.msra.mxu0 0.0
  %1246 = vmatprep.subr.mxu0 0.0
  %1247 = vmatpush1.msra.mxu0 0.0
  %1248 = vmatprep.subr.mxu0 0.0
  %1249 = vmatpush1.msra.mxu0 0.0
  %1250 = vmatprep.subr.mxu0 0.0
  %1251 = vmatpush1.msra.mxu0 0.0
  %1252 = vmatprep.subr.mxu0 0.0
  %1253 = vmatpush1.msra.mxu0 0.0
  %1254 = vmatprep.subr.mxu0 0.0
  %1255 = vmatpush1.msra.mxu0 0.0
  %1256 = vmatprep.subr.mxu0 0.0
  %1257 = vmatpush1.msra.mxu0 0.0
  %1258 = vmatprep.subr.mxu0 0.0
  %1259 = vmatpush1.msra.mxu0 0.0
  %1260 = vmatprep.subr.mxu0 0.0
  %1261 = vmatpush1.msra.mxu0 0.0
  %1262 = vmatprep.subr.mxu0 0.0
  %1263 = vmatpush1.msra.mxu0 0.0
  %1264 = vmatprep.subr.mxu0 0.0
  %1265 = vmatpush1.msra.mxu0 0.0
  %1266 = vmatprep.subr.mxu0 0.0
  %1267 = vmatpush1.msra.mxu0 %v1230
  %1268 = vmatprep.subr.mxu0 0.0
  %1269 = vmatpush1.msra.mxu0 %v1229
  %1270 = vmatprep.subr.mxu0 0.0
  %1271 = vmatpush1.msra.mxu0 %v1228
  %1272 = vmatprep.subr.mxu0 0.0
  %1273 = vmatpush1.msra.mxu0 %v1227
  %1274 = vmatprep.subr.mxu0 0.0
  %1275 = vmatpush2.msra.mxu0 0.0
  %1276 = vmatprep.subr.mxu0 0.0
  %1277 = vmatpush2.msra.mxu0 0.0
  %1278 = vmatprep.subr.mxu0 0.0
  %1279 = vmatpush2.msra.mxu0 0.0
  %1280 = vmatprep.subr.mxu0 0.0
  %1281 = vmatpush2.msra.mxu0 0.0
  %1282 = vmatprep.subr.mxu0 0.0
  %1283 = vmatpush2.msra.mxu0 0.0
  %1284 = vmatprep.subr.mxu0 0.0
  %1285 = vmatpush2.msra.mxu0 0.0
  %1286 = vmatprep.subr.mxu0 0.0
  %1287 = vmatpush2.msra.mxu0 0.0
  %1288 = vmatprep.subr.mxu0 0.0
  %1289 = vmatpush2.msra.mxu0 0.0
  %1290 = vmatprep.subr.mxu0 0.0
  %1291 = vmatpush2.msra.mxu0 0.0
  %1292 = vmatprep.subr.mxu0 0.0
  %1293 = vmatpush2.msra.mxu0 0.0
  %1294 = vmatprep.subr.mxu0 0.0
  %1295 = vmatpush2.msra.mxu0 0.0
  %1296 = vmatprep.subr.mxu0 0.0
  %1297 = vmatpush2.msra.mxu0 0.0
  %1298 = vmatprep.subr.mxu0 0.0
  %1299 = vmatpush2.msra.mxu0 0.0
  %1300 = vmatprep.subr.mxu0 0.0
  %1301 = vmatpush2.msra.mxu0 0.0
  %1302 = vmatprep.subr.mxu0 0.0
  %1303 = vmatpush2.msra.mxu0 0.0
  %1304 = vmatprep.subr.mxu0 0.0
  %1305 = vmatpush2.msra.mxu0 0.0
  %1306 = vmatprep.mubr.f32.mxu0 0.0
  %1307 = vmatmul.mubr.f32.gmra.mxu0 %v1237
  %v1308 = vpop.f32.mrf.mxu0
  %v1309 = vadd.f32 %v1235, %v1308
  %v1310 = vpop.f32.mrf.mxu0
  %1311 = vmatprep.mubr.f32.mxu0 0.0
  %1312 = vmatmul.mubr.f32.gmra.mxu0 %v1240
  %v1313 = vpop.f32.mrf.mxu0
  %v1314 = vadd.f32 %v1235, %v1313
  %v1315 = vpop.f32.mrf.mxu0
  %1316 = vdwg.mxu0
  %v1317 = vld [vmem:[%s3 + $0x200] sm:$0xff]
  %v1318 = vld [vmem:[%s3 + $0x208] sm:$0xff]
  %v1319 = vld [vmem:[%s3 + $0x210] sm:$0xff]
  %v1320 = vld [vmem:[%s3 + $0x218] sm:$0xff]
  %v1321 = vld [vmem:[%s3 + $0x220] sm:$0x1]
  %v1322 = vlaneseq
  %v1323 = vshrl.u32 %v1322, 7
  %v1324 = vsub.s32 0, %v1323
  %v1325 = vrot.slane %v1321, %v1324
  %v1327 = vsel %vm27, %v1224, 0
  %1329 = vmatprep.subr.mxu0 0.0
  %1330 = vmatpush1.msra.mxu0 0.0
  %1331 = vmatprep.subr.mxu0 0.0
  %1332 = vmatpush1.msra.mxu0 0.0
  %1333 = vmatprep.subr.mxu0 0.0
  %1334 = vmatpush1.msra.mxu0 0.0
  %1335 = vmatprep.subr.mxu0 0.0
  %1336 = vmatpush1.msra.mxu0 0.0
  %1337 = vmatprep.subr.mxu0 0.0
  %1338 = vmatpush1.msra.mxu0 0.0
  %1339 = vmatprep.subr.mxu0 0.0
  %1340 = vmatpush1.msra.mxu0 0.0
  %1341 = vmatprep.subr.mxu0 0.0
  %1342 = vmatpush1.msra.mxu0 0.0
  %1343 = vmatprep.subr.mxu0 0.0
  %1344 = vmatpush1.msra.mxu0 0.0
  %1345 = vmatprep.subr.mxu0 0.0
  %1346 = vmatpush1.msra.mxu0 0.0
  %1347 = vmatprep.subr.mxu0 0.0
  %1348 = vmatpush1.msra.mxu0 0.0
  %1349 = vmatprep.subr.mxu0 0.0
  %1350 = vmatpush1.msra.mxu0 0.0
  %1351 = vmatprep.subr.mxu0 0.0
  %1352 = vmatpush1.msra.mxu0 0.0
  %1353 = vmatprep.subr.mxu0 0.0
  %1354 = vmatpush1.msra.mxu0 %v1320
  %1355 = vmatprep.subr.mxu0 0.0
  %1356 = vmatpush1.msra.mxu0 %v1319
  %1357 = vmatprep.subr.mxu0 0.0
  %1358 = vmatpush1.msra.mxu0 %v1318
  %1359 = vmatprep.subr.mxu0 0.0
  %1360 = vmatpush1.msra.mxu0 %v1317
  %1361 = vmatprep.subr.mxu0 0.0
  %1362 = vmatpush2.msra.mxu0 0.0
  %1363 = vmatprep.subr.mxu0 0.0
  %1364 = vmatpush2.msra.mxu0 0.0
  %1365 = vmatprep.subr.mxu0 0.0
  %1366 = vmatpush2.msra.mxu0 0.0
  %1367 = vmatprep.subr.mxu0 0.0
  %1368 = vmatpush2.msra.mxu0 0.0
  %1369 = vmatprep.subr.mxu0 0.0
  %1370 = vmatpush2.msra.mxu0 0.0
  %1371 = vmatprep.subr.mxu0 0.0
  %1372 = vmatpush2.msra.mxu0 0.0
  %1373 = vmatprep.subr.mxu0 0.0
  %1374 = vmatpush2.msra.mxu0 0.0
  %1375 = vmatprep.subr.mxu0 0.0
  %1376 = vmatpush2.msra.mxu0 0.0
  %1377 = vmatprep.subr.mxu0 0.0
  %1378 = vmatpush2.msra.mxu0 0.0
  %1379 = vmatprep.subr.mxu0 0.0
  %1380 = vmatpush2.msra.mxu0 0.0
  %1381 = vmatprep.subr.mxu0 0.0
  %1382 = vmatpush2.msra.mxu0 0.0
  %1383 = vmatprep.subr.mxu0 0.0
  %1384 = vmatpush2.msra.mxu0 0.0
  %1385 = vmatprep.subr.mxu0 0.0
  %1386 = vmatpush2.msra.mxu0 0.0
  %1387 = vmatprep.subr.mxu0 0.0
  %1388 = vmatpush2.msra.mxu0 0.0
  %1389 = vmatprep.subr.mxu0 0.0
  %1390 = vmatpush2.msra.mxu0 0.0
  %1391 = vmatprep.subr.mxu0 0.0
  %1392 = vmatpush2.msra.mxu0 0.0
  %1393 = vmatprep.mubr.f32.mxu0 0.0
  %1394 = vmatmul.mubr.f32.gmra.mxu0 %v1327
  %v1395 = vpop.f32.mrf.mxu0
  %v1396 = vadd.f32 %v1325, %v1395
  %v1397 = vpop.f32.mrf.mxu0
  %1398 = vdwg.mxu0
  %v1400 = vsel %vm27, %v1309, 0
  %v1403 = vsel %vm27, %v1314, 0
  %v1406 = vsel %vm27, %v1396, 0
  %1408 = vmatprep.subr.mxu0 0.0
  %1409 = vmatpush1.xpose.msra.mxu0 0.0
  %1410 = vmatprep.subr.mxu0 0.0
  %1411 = vmatpush1.xpose.msra.mxu0 0.0
  %1412 = vmatprep.subr.mxu0 0.0
  %1413 = vmatpush1.xpose.msra.mxu0 0.0
  %1414 = vmatprep.subr.mxu0 0.0
  %1415 = vmatpush1.xpose.msra.mxu0 0.0
  %1416 = vmatprep.subr.mxu0 0.0
  %1417 = vmatpush1.xpose.msra.mxu0 0.0
  %1418 = vmatprep.subr.mxu0 0.0
  %1419 = vmatpush1.xpose.msra.mxu0 0.0
  %1420 = vmatprep.subr.mxu0 0.0
  %1421 = vmatpush1.xpose.msra.mxu0 0.0
  %1422 = vmatprep.subr.mxu0 0.0
  %1423 = vmatpush1.xpose.msra.mxu0 0.0
  %1424 = vmatprep.subr.mxu0 0.0
  %1425 = vmatpush1.xpose.msra.mxu0 0.0
  %1426 = vmatprep.subr.mxu0 0.0
  %1427 = vmatpush1.xpose.msra.mxu0 0.0
  %1428 = vmatprep.subr.mxu0 0.0
  %1429 = vmatpush1.xpose.msra.mxu0 0.0
  %1430 = vmatprep.subr.mxu0 0.0
  %1431 = vmatpush1.xpose.msra.mxu0 0.0
  %1432 = vmatprep.subr.mxu0 0.0
  %1433 = vmatpush1.xpose.msra.mxu0 0.0
  %1434 = vmatprep.subr.mxu0 0.0
  %1435 = vmatpush1.xpose.msra.mxu0 0.0
  %1436 = vmatprep.subr.mxu0 0.0
  %1437 = vmatpush1.xpose.msra.mxu0 0.0
  %1438 = vmatprep.subr.mxu0 0.0
  %1439 = vmatpush1.xpose.msra.mxu0 %v1406
  %1440 = vmatprep.subr.mxu0 0.0
  %1441 = vmatpush2.xpose.msra.mxu0 0.0
  %1442 = vmatprep.subr.mxu0 0.0
  %1443 = vmatpush2.xpose.msra.mxu0 0.0
  %1444 = vmatprep.subr.mxu0 0.0
  %1445 = vmatpush2.xpose.msra.mxu0 0.0
  %1446 = vmatprep.subr.mxu0 0.0
  %1447 = vmatpush2.xpose.msra.mxu0 0.0
  %1448 = vmatprep.subr.mxu0 0.0
  %1449 = vmatpush2.xpose.msra.mxu0 0.0
  %1450 = vmatprep.subr.mxu0 0.0
  %1451 = vmatpush2.xpose.msra.mxu0 0.0
  %1452 = vmatprep.subr.mxu0 0.0
  %1453 = vmatpush2.xpose.msra.mxu0 0.0
  %1454 = vmatprep.subr.mxu0 0.0
  %1455 = vmatpush2.xpose.msra.mxu0 0.0
  %1456 = vmatprep.subr.mxu0 0.0
  %1457 = vmatpush2.xpose.msra.mxu0 0.0
  %1458 = vmatprep.subr.mxu0 0.0
  %1459 = vmatpush2.xpose.msra.mxu0 0.0
  %1460 = vmatprep.subr.mxu0 0.0
  %1461 = vmatpush2.xpose.msra.mxu0 0.0
  %1462 = vmatprep.subr.mxu0 0.0
  %1463 = vmatpush2.xpose.msra.mxu0 0.0
  %1464 = vmatprep.subr.mxu0 0.0
  %1465 = vmatpush2.xpose.msra.mxu0 0.0
  %1466 = vmatprep.subr.mxu0 0.0
  %1467 = vmatpush2.xpose.msra.mxu0 0.0
  %1468 = vmatprep.subr.mxu0 0.0
  %1469 = vmatpush2.xpose.msra.mxu0 0.0
  %1470 = vmatprep.subr.mxu0 0.0
  %1471 = vmatpush2.xpose.msra.mxu0 0.0
  %1472 = vmatprep.mubr.f32.mxu0 0.0
  %1473 = vmatmul.mubr.f32.gmra.mxu0 %v1400
  %v1474 = vpop.f32.mrf.mxu0
  %v1475 = vadd.f32 0.0, %v1474
  %v1476 = vpop.f32.mrf.mxu0
  %1477 = vmatprep.mubr.f32.mxu0 0.0
  %1478 = vmatmul.mubr.f32.gmra.mxu0 %v1403
  %v1479 = vpop.f32.mrf.mxu0
  %v1480 = vadd.f32 0.0, %v1479
  %v1481 = vpop.f32.mrf.mxu0
  %1482 = vdwg.mxu0
  %v1483 = vmul.f32 %v1475, 0.17677669
  %v1484 = vmul.f32 %v1480, 0.17677669
  %v1485 = vld [vmem:[%s3 + $0x300] sm:$0xff]
  %v1486 = vld [vmem:[%s3 + $0x308] sm:$0xff]
  %v1487 = vadd.f32 %v1483, %v1485
  %v1488 = vadd.f32 %v1484, %v1486
  %v1489 = vsel %vm283, %v1487, -inf
  %1490 = vmax.xlane.f32.xlu0 %v1489
  %v1491 = vpop.xlane.xlu0 %1490
  %v1492 = vsel %vm283, %v1488, -inf
  %1493 = vmax.xlane.f32.xlu0 %v1492
  %v1494 = vpop.xlane.xlu0 %1493
  %v1495 = vsub.f32 %v1487, %v1491
  %v1496 = vsub.f32 %v1488, %v1494
  %v1497 = vmul.f32 %v1495, 1.442695
  %v1498 = vpow.pop %v1497
  %v1499 = vmul.f32 %v1496, 1.442695
  %v1500 = vpow.pop %v1499
  %v1501 = vsel %vm283, %v1498, 0.0
  %1502 = vadd.xlane.f32.xlu0 %v1501
  %v1503 = vpop.xlane.xlu0 %1502
  %v1504 = vsel %vm283, %v1500, 0.0
  %1505 = vadd.xlane.f32.xlu0 %v1504
  %v1506 = vpop.xlane.xlu0 %1505
  %v1507 = vrcp.pop %v1503
  %v1508 = vrcp.pop %v1506
  %v1509 = vmul.f32 %v1498, %v1507
  %v1510 = vmul.f32 %v1500, %v1508
  %1511 = vrot.lane.b32.xlu0 %v1396, 96
  %v1512 = vpop.permute.xlu0 %1511
  %v1514 = vsel %vm283, %v1509, 0
  %v1517 = vsel %vm283, %v1510, 0
  %v1519 = vsel %vm293, %v1512, 0
  %1521 = vmatprep.subr.mxu0 0.0
  %1522 = vmatpush1.msra.mxu0 0.0
  %1523 = vmatprep.subr.mxu0 0.0
  %1524 = vmatpush1.msra.mxu0 0.0
  %1525 = vmatprep.subr.mxu0 0.0
  %1526 = vmatpush1.msra.mxu0 0.0
  %1527 = vmatprep.subr.mxu0 0.0
  %1528 = vmatpush1.msra.mxu0 0.0
  %1529 = vmatprep.subr.mxu0 0.0
  %1530 = vmatpush1.msra.mxu0 0.0
  %1531 = vmatprep.subr.mxu0 0.0
  %1532 = vmatpush1.msra.mxu0 0.0
  %1533 = vmatprep.subr.mxu0 0.0
  %1534 = vmatpush1.msra.mxu0 0.0
  %1535 = vmatprep.subr.mxu0 0.0
  %1536 = vmatpush1.msra.mxu0 0.0
  %1537 = vmatprep.subr.mxu0 0.0
  %1538 = vmatpush1.msra.mxu0 0.0
  %1539 = vmatprep.subr.mxu0 0.0
  %1540 = vmatpush1.msra.mxu0 0.0
  %1541 = vmatprep.subr.mxu0 0.0
  %1542 = vmatpush1.msra.mxu0 0.0
  %1543 = vmatprep.subr.mxu0 0.0
  %1544 = vmatpush1.msra.mxu0 0.0
  %1545 = vmatprep.subr.mxu0 0.0
  %1546 = vmatpush1.msra.mxu0 0.0
  %1547 = vmatprep.subr.mxu0 0.0
  %1548 = vmatpush1.msra.mxu0 0.0
  %1549 = vmatprep.subr.mxu0 0.0
  %1550 = vmatpush1.msra.mxu0 0.0
  %1551 = vmatprep.subr.mxu0 0.0
  %1552 = vmatpush1.msra.mxu0 %v1519
  %1553 = vmatprep.subr.mxu0 0.0
  %1554 = vmatpush2.msra.mxu0 0.0
  %1555 = vmatprep.subr.mxu0 0.0
  %1556 = vmatpush2.msra.mxu0 0.0
  %1557 = vmatprep.subr.mxu0 0.0
  %1558 = vmatpush2.msra.mxu0 0.0
  %1559 = vmatprep.subr.mxu0 0.0
  %1560 = vmatpush2.msra.mxu0 0.0
  %1561 = vmatprep.subr.mxu0 0.0
  %1562 = vmatpush2.msra.mxu0 0.0
  %1563 = vmatprep.subr.mxu0 0.0
  %1564 = vmatpush2.msra.mxu0 0.0
  %1565 = vmatprep.subr.mxu0 0.0
  %1566 = vmatpush2.msra.mxu0 0.0
  %1567 = vmatprep.subr.mxu0 0.0
  %1568 = vmatpush2.msra.mxu0 0.0
  %1569 = vmatprep.subr.mxu0 0.0
  %1570 = vmatpush2.msra.mxu0 0.0
  %1571 = vmatprep.subr.mxu0 0.0
  %1572 = vmatpush2.msra.mxu0 0.0
  %1573 = vmatprep.subr.mxu0 0.0
  %1574 = vmatpush2.msra.mxu0 0.0
  %1575 = vmatprep.subr.mxu0 0.0
  %1576 = vmatpush2.msra.mxu0 0.0
  %1577 = vmatprep.subr.mxu0 0.0
  %1578 = vmatpush2.msra.mxu0 0.0
  %1579 = vmatprep.subr.mxu0 0.0
  %1580 = vmatpush2.msra.mxu0 0.0
  %1581 = vmatprep.subr.mxu0 0.0
  %1582 = vmatpush2.msra.mxu0 0.0
  %1583 = vmatprep.subr.mxu0 0.0
  %1584 = vmatpush2.msra.mxu0 0.0
  %1585 = vmatprep.mubr.f32.mxu0 0.0
  %1586 = vmatmul.mubr.f32.gmra.mxu0 %v1514
  %v1587 = vpop.f32.mrf.mxu0
  %v1588 = vadd.f32 0.0, %v1587
  %v1589 = vpop.f32.mrf.mxu0
  %1590 = vmatprep.mubr.f32.mxu0 0.0
  %1591 = vmatmul.mubr.f32.gmra.mxu0 %v1517
  %v1592 = vpop.f32.mrf.mxu0
  %v1593 = vadd.f32 0.0, %v1592
  %v1594 = vpop.f32.mrf.mxu0
  %1595 = vdwg.mxu0
  %v1596 = vld [vmem:[%s3 + $0x228] sm:$0xff]
  %v1597 = vld [vmem:[%s3 + $0x230] sm:$0xff]
  %v1598 = vld [vmem:[%s3 + $0x238] sm:$0xff]
  %v1599 = vld [vmem:[%s3 + $0x240] sm:$0xff]
  %v1600 = vld [vmem:[%s3 + $0x248] sm:$0x1]
  %v1601 = vlaneseq
  %v1602 = vshrl.u32 %v1601, 7
  %v1603 = vsub.s32 0, %v1602
  %v1604 = vrot.slane %v1600, %v1603
  %v1606 = vsel %vm27, %v1588, 0
  %v1609 = vsel %vm27, %v1593, 0
  %1611 = vmatprep.subr.mxu0 0.0
  %1612 = vmatpush1.msra.mxu0 0.0
  %1613 = vmatprep.subr.mxu0 0.0
  %1614 = vmatpush1.msra.mxu0 0.0
  %1615 = vmatprep.subr.mxu0 0.0
  %1616 = vmatpush1.msra.mxu0 0.0
  %1617 = vmatprep.subr.mxu0 0.0
  %1618 = vmatpush1.msra.mxu0 0.0
  %1619 = vmatprep.subr.mxu0 0.0
  %1620 = vmatpush1.msra.mxu0 0.0
  %1621 = vmatprep.subr.mxu0 0.0
  %1622 = vmatpush1.msra.mxu0 0.0
  %1623 = vmatprep.subr.mxu0 0.0
  %1624 = vmatpush1.msra.mxu0 0.0
  %1625 = vmatprep.subr.mxu0 0.0
  %1626 = vmatpush1.msra.mxu0 0.0
  %1627 = vmatprep.subr.mxu0 0.0
  %1628 = vmatpush1.msra.mxu0 0.0
  %1629 = vmatprep.subr.mxu0 0.0
  %1630 = vmatpush1.msra.mxu0 0.0
  %1631 = vmatprep.subr.mxu0 0.0
  %1632 = vmatpush1.msra.mxu0 0.0
  %1633 = vmatprep.subr.mxu0 0.0
  %1634 = vmatpush1.msra.mxu0 0.0
  %1635 = vmatprep.subr.mxu0 0.0
  %1636 = vmatpush1.msra.mxu0 %v1599
  %1637 = vmatprep.subr.mxu0 0.0
  %1638 = vmatpush1.msra.mxu0 %v1598
  %1639 = vmatprep.subr.mxu0 0.0
  %1640 = vmatpush1.msra.mxu0 %v1597
  %1641 = vmatprep.subr.mxu0 0.0
  %1642 = vmatpush1.msra.mxu0 %v1596
  %1643 = vmatprep.subr.mxu0 0.0
  %1644 = vmatpush2.msra.mxu0 0.0
  %1645 = vmatprep.subr.mxu0 0.0
  %1646 = vmatpush2.msra.mxu0 0.0
  %1647 = vmatprep.subr.mxu0 0.0
  %1648 = vmatpush2.msra.mxu0 0.0
  %1649 = vmatprep.subr.mxu0 0.0
  %1650 = vmatpush2.msra.mxu0 0.0
  %1651 = vmatprep.subr.mxu0 0.0
  %1652 = vmatpush2.msra.mxu0 0.0
  %1653 = vmatprep.subr.mxu0 0.0
  %1654 = vmatpush2.msra.mxu0 0.0
  %1655 = vmatprep.subr.mxu0 0.0
  %1656 = vmatpush2.msra.mxu0 0.0
  %1657 = vmatprep.subr.mxu0 0.0
  %1658 = vmatpush2.msra.mxu0 0.0
  %1659 = vmatprep.subr.mxu0 0.0
  %1660 = vmatpush2.msra.mxu0 0.0
  %1661 = vmatprep.subr.mxu0 0.0
  %1662 = vmatpush2.msra.mxu0 0.0
  %1663 = vmatprep.subr.mxu0 0.0
  %1664 = vmatpush2.msra.mxu0 0.0
  %1665 = vmatprep.subr.mxu0 0.0
  %1666 = vmatpush2.msra.mxu0 0.0
  %1667 = vmatprep.subr.mxu0 0.0
  %1668 = vmatpush2.msra.mxu0 0.0
  %1669 = vmatprep.subr.mxu0 0.0
  %1670 = vmatpush2.msra.mxu0 0.0
  %1671 = vmatprep.subr.mxu0 0.0
  %1672 = vmatpush2.msra.mxu0 0.0
  %1673 = vmatprep.subr.mxu0 0.0
  %1674 = vmatpush2.msra.mxu0 0.0
  %1675 = vmatprep.mubr.f32.mxu0 0.0
  %1676 = vmatmul.mubr.f32.gmra.mxu0 %v1606
  %v1677 = vpop.f32.mrf.mxu0
  %v1678 = vadd.f32 %v1604, %v1677
  %v1679 = vpop.f32.mrf.mxu0
  %1680 = vmatprep.mubr.f32.mxu0 0.0
  %1681 = vmatmul.mubr.f32.gmra.mxu0 %v1609
  %v1682 = vpop.f32.mrf.mxu0
  %v1683 = vadd.f32 %v1604, %v1682
  %v1684 = vpop.f32.mrf.mxu0
  %1685 = vdwg.mxu0
  %v1686 = vadd.f32 %v552, %v1678
  %v1687 = vadd.f32 %v557, %v1683
  %v1688 = vld [vmem:[%s3 + $0x250] sm:$0xff]
  %v1689 = vld [vmem:[%s3 + $0x258] sm:$0xff]
  %v1690 = vld [vmem:[%s3 + $0x260] sm:$0xff]
  %v1691 = vld [vmem:[%s3 + $0x268] sm:$0xff]
  %v1692 = vld [vmem:[%s3 + $0x270] sm:$0x1]
  %v1693 = vlaneseq
  %v1694 = vshrl.u32 %v1693, 7
  %v1695 = vsub.s32 0, %v1694
  %v1696 = vrot.slane %v1692, %v1695
  %v1698 = vsel %vm27, %v1686, 0
  %v1701 = vsel %vm27, %v1687, 0
  %1703 = vmatprep.subr.mxu0 0.0
  %1704 = vmatpush1.msra.mxu0 0.0
  %1705 = vmatprep.subr.mxu0 0.0
  %1706 = vmatpush1.msra.mxu0 0.0
  %1707 = vmatprep.subr.mxu0 0.0
  %1708 = vmatpush1.msra.mxu0 0.0
  %1709 = vmatprep.subr.mxu0 0.0
  %1710 = vmatpush1.msra.mxu0 0.0
  %1711 = vmatprep.subr.mxu0 0.0
  %1712 = vmatpush1.msra.mxu0 0.0
  %1713 = vmatprep.subr.mxu0 0.0
  %1714 = vmatpush1.msra.mxu0 0.0
  %1715 = vmatprep.subr.mxu0 0.0
  %1716 = vmatpush1.msra.mxu0 0.0
  %1717 = vmatprep.subr.mxu0 0.0
  %1718 = vmatpush1.msra.mxu0 0.0
  %1719 = vmatprep.subr.mxu0 0.0
  %1720 = vmatpush1.msra.mxu0 0.0
  %1721 = vmatprep.subr.mxu0 0.0
  %1722 = vmatpush1.msra.mxu0 0.0
  %1723 = vmatprep.subr.mxu0 0.0
  %1724 = vmatpush1.msra.mxu0 0.0
  %1725 = vmatprep.subr.mxu0 0.0
  %1726 = vmatpush1.msra.mxu0 0.0
  %1727 = vmatprep.subr.mxu0 0.0
  %1728 = vmatpush1.msra.mxu0 %v1691
  %1729 = vmatprep.subr.mxu0 0.0
  %1730 = vmatpush1.msra.mxu0 %v1690
  %1731 = vmatprep.subr.mxu0 0.0
  %1732 = vmatpush1.msra.mxu0 %v1689
  %1733 = vmatprep.subr.mxu0 0.0
  %1734 = vmatpush1.msra.mxu0 %v1688
  %1735 = vmatprep.subr.mxu0 0.0
  %1736 = vmatpush2.msra.mxu0 0.0
  %1737 = vmatprep.subr.mxu0 0.0
  %1738 = vmatpush2.msra.mxu0 0.0
  %1739 = vmatprep.subr.mxu0 0.0
  %1740 = vmatpush2.msra.mxu0 0.0
  %1741 = vmatprep.subr.mxu0 0.0
  %1742 = vmatpush2.msra.mxu0 0.0
  %1743 = vmatprep.subr.mxu0 0.0
  %1744 = vmatpush2.msra.mxu0 0.0
  %1745 = vmatprep.subr.mxu0 0.0
  %1746 = vmatpush2.msra.mxu0 0.0
  %1747 = vmatprep.subr.mxu0 0.0
  %1748 = vmatpush2.msra.mxu0 0.0
  %1749 = vmatprep.subr.mxu0 0.0
  %1750 = vmatpush2.msra.mxu0 0.0
  %1751 = vmatprep.subr.mxu0 0.0
  %1752 = vmatpush2.msra.mxu0 0.0
  %1753 = vmatprep.subr.mxu0 0.0
  %1754 = vmatpush2.msra.mxu0 0.0
  %1755 = vmatprep.subr.mxu0 0.0
  %1756 = vmatpush2.msra.mxu0 0.0
  %1757 = vmatprep.subr.mxu0 0.0
  %1758 = vmatpush2.msra.mxu0 0.0
  %1759 = vmatprep.subr.mxu0 0.0
  %1760 = vmatpush2.msra.mxu0 0.0
  %1761 = vmatprep.subr.mxu0 0.0
  %1762 = vmatpush2.msra.mxu0 0.0
  %1763 = vmatprep.subr.mxu0 0.0
  %1764 = vmatpush2.msra.mxu0 0.0
  %1765 = vmatprep.subr.mxu0 0.0
  %1766 = vmatpush2.msra.mxu0 0.0
  %1767 = vmatprep.mubr.f32.mxu0 0.0
  %1768 = vmatmul.mubr.f32.gmra.mxu0 %v1698
  %v1769 = vpop.f32.mrf.mxu0
  %v1770 = vadd.f32 %v1696, %v1769
  %v1771 = vpop.f32.mrf.mxu0
  %1772 = vmatprep.mubr.f32.mxu0 0.0
  %1773 = vmatmul.mubr.f32.gmra.mxu0 %v1701
  %v1774 = vpop.f32.mrf.mxu0
  %v1775 = vadd.f32 %v1696, %v1774
  %v1776 = vpop.f32.mrf.mxu0
  %1777 = vdwg.mxu0
  %v1778 = vmul.f32 %v1770, %v1770
  %v1779 = vmul.f32 %v1775, %v1775
  %v1780 = vmul.f32 %v1770, %v1778
  %v1781 = vmul.f32 %v1775, %v1779
  %v1782 = vmul.f32 %v1780, 0.044715
  %v1783 = vmul.f32 %v1781, 0.044715
  %v1784 = vadd.f32 %v1770, %v1782
  %v1785 = vadd.f32 %v1775, %v1783
  %v1786 = vmul.f32 %v1784, 0.7978846
  %v1787 = vmul.f32 %v1785, 0.7978846
  %v1788 = vtanh.pop %v1786
  %v1789 = vtanh.pop %v1787
  %v1790 = vadd.f32 %v1788, 1.0
  %v1791 = vadd.f32 %v1789, 1.0
  %v1792 = vmul.f32 %v1790, 0.5
  %v1793 = vmul.f32 %v1791, 0.5
  %v1794 = vmul.f32 %v1770, %v1792
  %v1795 = vmul.f32 %v1775, %v1793
  %v1796 = vld [vmem:[%s3 + $0x278] sm:$0xff]
  %v1797 = vld [vmem:[%s3 + $0x280] sm:$0xff]
  %v1798 = vld [vmem:[%s3 + $0x288] sm:$0xff]
  %v1799 = vld [vmem:[%s3 + $0x290] sm:$0xff]
  %v1800 = vld [vmem:[%s3 + $0x298] sm:$0xff]
  %v1801 = vld [vmem:[%s3 + $0x2a0] sm:$0xff]
  %v1802 = vld [vmem:[%s3 + $0x2a8] sm:$0xff]
  %v1803 = vld [vmem:[%s3 + $0x2b0] sm:$0xff]
  %v1804 = vld [vmem:[%s3 + $0x2b8] sm:$0xff]
  %v1805 = vld [vmem:[%s3 + $0x2c0] sm:$0xff]
  %v1806 = vld [vmem:[%s3 + $0x2c8] sm:$0xff]
  %v1807 = vld [vmem:[%s3 + $0x2d0] sm:$0xff]
  %v1808 = vld [vmem:[%s3 + $0x2d8] sm:$0xff]
  %v1809 = vld [vmem:[%s3 + $0x2e0] sm:$0xff]
  %v1810 = vld [vmem:[%s3 + $0x2e8] sm:$0xff]
  %v1811 = vld [vmem:[%s3 + $0x2f0] sm:$0xff]
  %v1812 = vld [vmem:[%s3 + $0x2f8] sm:$0x1]
  %v1813 = vlaneseq
  %v1814 = vshrl.u32 %v1813, 7
  %v1815 = vsub.s32 0, %v1814
  %v1816 = vrot.slane %v1812, %v1815
  %1817 = vmatprep.subr.mxu0 0.0
  %1818 = vmatpush1.msra.mxu0 %v1811
  %1819 = vmatprep.subr.mxu0 0.0
  %1820 = vmatpush1.msra.mxu0 %v1810
  %1821 = vmatprep.subr.mxu0 0.0
  %1822 = vmatpush1.msra.mxu0 %v1809
  %1823 = vmatprep.subr.mxu0 0.0
  %1824 = vmatpush1.msra.mxu0 %v1808
  %1825 = vmatprep.subr.mxu0 0.0
  %1826 = vmatpush1.msra.mxu0 %v1807
  %1827 = vmatprep.subr.mxu0 0.0
  %1828 = vmatpush1.msra.mxu0 %v1806
  %1829 = vmatprep.subr.mxu0 0.0
  %1830 = vmatpush1.msra.mxu0 %v1805
  %1831 = vmatprep.subr.mxu0 0.0
  %1832 = vmatpush1.msra.mxu0 %v1804
  %1833 = vmatprep.subr.mxu0 0.0
  %1834 = vmatpush1.msra.mxu0 %v1803
  %1835 = vmatprep.subr.mxu0 0.0
  %1836 = vmatpush1.msra.mxu0 %v1802
  %1837 = vmatprep.subr.mxu0 0.0
  %1838 = vmatpush1.msra.mxu0 %v1801
  %1839 = vmatprep.subr.mxu0 0.0
  %1840 = vmatpush1.msra.mxu0 %v1800
  %1841 = vmatprep.subr.mxu0 0.0
  %1842 = vmatpush1.msra.mxu0 %v1799
  %1843 = vmatprep.subr.mxu0 0.0
  %1844 = vmatpush1.msra.mxu0 %v1798
  %1845 = vmatprep.subr.mxu0 0.0
  %1846 = vmatpush1.msra.mxu0 %v1797
  %1847 = vmatprep.subr.mxu0 0.0
  %1848 = vmatpush1.msra.mxu0 %v1796
  %1849 = vmatprep.subr.mxu0 0.0
  %1850 = vmatpush2.msra.mxu0 0.0
  %1851 = vmatprep.subr.mxu0 0.0
  %1852 = vmatpush2.msra.mxu0 0.0
  %1853 = vmatprep.subr.mxu0 0.0
  %1854 = vmatpush2.msra.mxu0 0.0
  %1855 = vmatprep.subr.mxu0 0.0
  %1856 = vmatpush2.msra.mxu0 0.0
  %1857 = vmatprep.subr.mxu0 0.0
  %1858 = vmatpush2.msra.mxu0 0.0
  %1859 = vmatprep.subr.mxu0 0.0
  %1860 = vmatpush2.msra.mxu0 0.0
  %1861 = vmatprep.subr.mxu0 0.0
  %1862 = vmatpush2.msra.mxu0 0.0
  %1863 = vmatprep.subr.mxu0 0.0
  %1864 = vmatpush2.msra.mxu0 0.0
  %1865 = vmatprep.subr.mxu0 0.0
  %1866 = vmatpush2.msra.mxu0 0.0
  %1867 = vmatprep.subr.mxu0 0.0
  %1868 = vmatpush2.msra.mxu0 0.0
  %1869 = vmatprep.subr.mxu0 0.0
  %1870 = vmatpush2.msra.mxu0 0.0
  %1871 = vmatprep.subr.mxu0 0.0
  %1872 = vmatpush2.msra.mxu0 0.0
  %1873 = vmatprep.subr.mxu0 0.0
  %1874 = vmatpush2.msra.mxu0 0.0
  %1875 = vmatprep.subr.mxu0 0.0
  %1876 = vmatpush2.msra.mxu0 0.0
  %1877 = vmatprep.subr.mxu0 0.0
  %1878 = vmatpush2.msra.mxu0 0.0
  %1879 = vmatprep.subr.mxu0 0.0
  %1880 = vmatpush2.msra.mxu0 0.0
  %1881 = vmatprep.mubr.f32.mxu0 0.0
  %1882 = vmatmul.mubr.f32.gmra.mxu0 %v1794
  %v1883 = vpop.f32.mrf.mxu0
  %v1884 = vadd.f32 %v1816, %v1883
  %v1885 = vpop.f32.mrf.mxu0
  %1886 = vmatprep.mubr.f32.mxu0 0.0
  %1887 = vmatmul.mubr.f32.gmra.mxu0 %v1795
  %v1888 = vpop.f32.mrf.mxu0
  %v1889 = vadd.f32 %v1816, %v1888
  %v1890 = vpop.f32.mrf.mxu0
  %1891 = vdwg.mxu0
  %v1892 = vadd.f32 %v1686, %v1884
  %v1893 = vadd.f32 %v1687, %v1889
  %v1894 = vld [vmem:[%s3 + $0x310] sm:$0xff]
  %v1895 = vld [vmem:[%s3 + $0x318] sm:$0xff]
  %v1896 = vld [vmem:[%s3 + $0x320] sm:$0xff]
  %v1897 = vld [vmem:[%s3 + $0x328] sm:$0xff]
  %v1898 = vld [vmem:[%s3 + $0x330] sm:$0x1]
  %v1899 = vlaneseq
  %v1900 = vshrl.u32 %v1899, 7
  %v1901 = vsub.s32 0, %v1900
  %v1902 = vrot.slane %v1898, %v1901
  %v1904 = vsel %vm27, %v1892, 0
  %v1907 = vsel %vm27, %v1893, 0
  %1909 = vmatprep.subr.mxu0 0.0
  %1910 = vmatpush1.msra.mxu0 0.0
  %1911 = vmatprep.subr.mxu0 0.0
  %1912 = vmatpush1.msra.mxu0 0.0
  %1913 = vmatprep.subr.mxu0 0.0
  %1914 = vmatpush1.msra.mxu0 0.0
  %1915 = vmatprep.subr.mxu0 0.0
  %1916 = vmatpush1.msra.mxu0 0.0
  %1917 = vmatprep.subr.mxu0 0.0
  %1918 = vmatpush1.msra.mxu0 0.0
  %1919 = vmatprep.subr.mxu0 0.0
  %1920 = vmatpush1.msra.mxu0 0.0
  %1921 = vmatprep.subr.mxu0 0.0
  %1922 = vmatpush1.msra.mxu0 0.0
  %1923 = vmatprep.subr.mxu0 0.0
  %1924 = vmatpush1.msra.mxu0 0.0
  %1925 = vmatprep.subr.mxu0 0.0
  %1926 = vmatpush1.msra.mxu0 0.0
  %1927 = vmatprep.subr.mxu0 0.0
  %1928 = vmatpush1.msra.mxu0 0.0
  %1929 = vmatprep.subr.mxu0 0.0
  %1930 = vmatpush1.msra.mxu0 0.0
  %1931 = vmatprep.subr.mxu0 0.0
  %1932 = vmatpush1.msra.mxu0 0.0
  %1933 = vmatprep.subr.mxu0 0.0
  %1934 = vmatpush1.msra.mxu0 %v1897
  %1935 = vmatprep.subr.mxu0 0.0
  %1936 = vmatpush1.msra.mxu0 %v1896
  %1937 = vmatprep.subr.mxu0 0.0
  %1938 = vmatpush1.msra.mxu0 %v1895
  %1939 = vmatprep.subr.mxu0 0.0
  %1940 = vmatpush1.msra.mxu0 %v1894
  %1941 = vmatprep.subr.mxu0 0.0
  %1942 = vmatpush2.msra.mxu0 0.0
  %1943 = vmatprep.subr.mxu0 0.0
  %1944 = vmatpush2.msra.mxu0 0.0
  %1945 = vmatprep.subr.mxu0 0.0
  %1946 = vmatpush2.msra.mxu0 0.0
  %1947 = vmatprep.subr.mxu0 0.0
  %1948 = vmatpush2.msra.mxu0 0.0
  %1949 = vmatprep.subr.mxu0 0.0
  %1950 = vmatpush2.msra.mxu0 0.0
  %1951 = vmatprep.subr.mxu0 0.0
  %1952 = vmatpush2.msra.mxu0 0.0
  %1953 = vmatprep.subr.mxu0 0.0
  %1954 = vmatpush2.msra.mxu0 0.0
  %1955 = vmatprep.subr.mxu0 0.0
  %1956 = vmatpush2.msra.mxu0 0.0
  %1957 = vmatprep.subr.mxu0 0.0
  %1958 = vmatpush2.msra.mxu0 0.0
  %1959 = vmatprep.subr.mxu0 0.0
  %1960 = vmatpush2.msra.mxu0 0.0
  %1961 = vmatprep.subr.mxu0 0.0
  %1962 = vmatpush2.msra.mxu0 0.0
  %1963 = vmatprep.subr.mxu0 0.0
  %1964 = vmatpush2.msra.mxu0 0.0
  %1965 = vmatprep.subr.mxu0 0.0
  %1966 = vmatpush2.msra.mxu0 0.0
  %1967 = vmatprep.subr.mxu0 0.0
  %1968 = vmatpush2.msra.mxu0 0.0
  %1969 = vmatprep.subr.mxu0 0.0
  %1970 = vmatpush2.msra.mxu0 0.0
  %1971 = vmatprep.subr.mxu0 0.0
  %1972 = vmatpush2.msra.mxu0 0.0
  %1973 = vmatprep.mubr.f32.mxu0 0.0
  %1974 = vmatmul.mubr.f32.gmra.mxu0 %v1904
  %v1975 = vpop.f32.mrf.mxu0
  %v1976 = vadd.f32 %v1902, %v1975
  %v1977 = vpop.f32.mrf.mxu0
  %1978 = vmatprep.mubr.f32.mxu0 0.0
  %1979 = vmatmul.mubr.f32.gmra.mxu0 %v1907
  %v1980 = vpop.f32.mrf.mxu0
  %v1981 = vadd.f32 %v1902, %v1980
  %v1982 = vpop.f32.mrf.mxu0
  %1983 = vdwg.mxu0
  %v1984 = vmul.f32 %v1976, %v1976
  %v1985 = vmul.f32 %v1981, %v1981
  %v1986 = vmul.f32 %v1976, %v1984
  %v1987 = vmul.f32 %v1981, %v1985
  %v1988 = vmul.f32 %v1986, 0.044715
  %v1989 = vmul.f32 %v1987, 0.044715
  %v1990 = vadd.f32 %v1976, %v1988
  %v1991 = vadd.f32 %v1981, %v1989
  %v1992 = vmul.f32 %v1990, 0.7978846
  %v1993 = vmul.f32 %v1991, 0.7978846
  %v1994 = vtanh.pop %v1992
  %v1995 = vtanh.pop %v1993
  %v1996 = vadd.f32 %v1994, 1.0
  %v1997 = vadd.f32 %v1995, 1.0
  %v1998 = vmul.f32 %v1996, 0.5
  %v1999 = vmul.f32 %v1997, 0.5
  %v2000 = vmul.f32 %v1976, %v1998
  %v2001 = vmul.f32 %v1981, %v1999
  %v2002 = vld [vmem:[%s3 + $0x338] sm:$0xff]
  %v2003 = vld [vmem:[%s3 + $0x340] sm:$0xff]
  %v2004 = vld [vmem:[%s3 + $0x348] sm:$0xff]
  %v2005 = vld [vmem:[%s3 + $0x350] sm:$0xff]
  %v2006 = vld [vmem:[%s3 + $0x358] sm:$0xff]
  %v2007 = vld [vmem:[%s3 + $0x360] sm:$0xff]
  %v2008 = vld [vmem:[%s3 + $0x368] sm:$0xff]
  %v2009 = vld [vmem:[%s3 + $0x370] sm:$0xff]
  %v2010 = vld [vmem:[%s3 + $0x378] sm:$0xff]
  %v2011 = vld [vmem:[%s3 + $0x380] sm:$0xff]
  %v2012 = vld [vmem:[%s3 + $0x388] sm:$0xff]
  %v2013 = vld [vmem:[%s3 + $0x390] sm:$0xff]
  %v2014 = vld [vmem:[%s3 + $0x398] sm:$0xff]
  %v2015 = vld [vmem:[%s3 + $0x3a0] sm:$0xff]
  %v2016 = vld [vmem:[%s3 + $0x3a8] sm:$0xff]
  %v2017 = vld [vmem:[%s3 + $0x3b0] sm:$0xff]
  %v2018 = vld [vmem:[%s3 + $0x3b8] sm:$0x1]
  %v2019 = vlaneseq
  %v2020 = vshrl.u32 %v2019, 7
  %v2021 = vsub.s32 0, %v2020
  %v2022 = vrot.slane %v2018, %v2021
  %2023 = vmatprep.subr.mxu0 0.0
  %2024 = vmatpush1.msra.mxu0 %v2017
  %2025 = vmatprep.subr.mxu0 0.0
  %2026 = vmatpush1.msra.mxu0 %v2016
  %2027 = vmatprep.subr.mxu0 0.0
  %2028 = vmatpush1.msra.mxu0 %v2015
  %2029 = vmatprep.subr.mxu0 0.0
  %2030 = vmatpush1.msra.mxu0 %v2014
  %2031 = vmatprep.subr.mxu0 0.0
  %2032 = vmatpush1.msra.mxu0 %v2013
  %2033 = vmatprep.subr.mxu0 0.0
  %2034 = vmatpush1.msra.mxu0 %v2012
  %2035 = vmatprep.subr.mxu0 0.0
  %2036 = vmatpush1.msra.mxu0 %v2011
  %2037 = vmatprep.subr.mxu0 0.0
  %2038 = vmatpush1.msra.mxu0 %v2010
  %2039 = vmatprep.subr.mxu0 0.0
  %2040 = vmatpush1.msra.mxu0 %v2009
  %2041 = vmatprep.subr.mxu0 0.0
  %2042 = vmatpush1.msra.mxu0 %v2008
  %2043 = vmatprep.subr.mxu0 0.0
  %2044 = vmatpush1.msra.mxu0 %v2007
  %2045 = vmatprep.subr.mxu0 0.0
  %2046 = vmatpush1.msra.mxu0 %v2006
  %2047 = vmatprep.subr.mxu0 0.0
  %2048 = vmatpush1.msra.mxu0 %v2005
  %2049 = vmatprep.subr.mxu0 0.0
  %2050 = vmatpush1.msra.mxu0 %v2004
  %2051 = vmatprep.subr.mxu0 0.0
  %2052 = vmatpush1.msra.mxu0 %v2003
  %2053 = vmatprep.subr.mxu0 0.0
  %2054 = vmatpush1.msra.mxu0 %v2002
  %2055 = vmatprep.subr.mxu0 0.0
  %2056 = vmatpush2.msra.mxu0 0.0
  %2057 = vmatprep.subr.mxu0 0.0
  %2058 = vmatpush2.msra.mxu0 0.0
  %2059 = vmatprep.subr.mxu0 0.0
  %2060 = vmatpush2.msra.mxu0 0.0
  %2061 = vmatprep.subr.mxu0 0.0
  %2062 = vmatpush2.msra.mxu0 0.0
  %2063 = vmatprep.subr.mxu0 0.0
  %2064 = vmatpush2.msra.mxu0 0.0
  %2065 = vmatprep.subr.mxu0 0.0
  %2066 = vmatpush2.msra.mxu0 0.0
  %2067 = vmatprep.subr.mxu0 0.0
  %2068 = vmatpush2.msra.mxu0 0.0
  %2069 = vmatprep.subr.mxu0 0.0
  %2070 = vmatpush2.msra.mxu0 0.0
  %2071 = vmatprep.subr.mxu0 0.0
  %2072 = vmatpush2.msra.mxu0 0.0
  %2073 = vmatprep.subr.mxu0 0.0
  %2074 = vmatpush2.msra.mxu0 0.0
  %2075 = vmatprep.subr.mxu0 0.0
  %2076 = vmatpush2.msra.mxu0 0.0
  %2077 = vmatprep.subr.mxu0 0.0
  %2078 = vmatpush2.msra.mxu0 0.0
  %2079 = vmatprep.subr.mxu0 0.0
  %2080 = vmatpush2.msra.mxu0 0.0
  %2081 = vmatprep.subr.mxu0 0.0
  %2082 = vmatpush2.msra.mxu0 0.0
  %2083 = vmatprep.subr.mxu0 0.0
  %2084 = vmatpush2.msra.mxu0 0.0
  %2085 = vmatprep.subr.mxu0 0.0
  %2086 = vmatpush2.msra.mxu0 0.0
  %2087 = vmatprep.mubr.f32.mxu0 0.0
  %2088 = vmatmul.mubr.f32.gmra.mxu0 %v2000
  %v2089 = vpop.f32.mrf.mxu0
  %v2090 = vadd.f32 %v2022, %v2089
  %v2091 = vpop.f32.mrf.mxu0
  %2092 = vmatprep.mubr.f32.mxu0 0.0
  %2093 = vmatmul.mubr.f32.gmra.mxu0 %v2001
  %v2094 = vpop.f32.mrf.mxu0
  %v2095 = vadd.f32 %v2022, %v2094
  %v2096 = vpop.f32.mrf.mxu0
  %2097 = vdwg.mxu0
  %2098 = vst.msk [vmem:[%s4] sm:$0xff] %vm283, %v2090
  %2099 = vst.msk [vmem:[%s4 + $0x8] sm:$0xff] %vm283, %v2095
  // Predicated region
  $region18: #{_lambda_.1} parent=0 // pred_check
    _
  $region19: #{_lambda_.1} parent=0 // pred_check_branch
    %2101 = sbr.rel (0) target = $region21
  $region20: #{_lambda_.1} parent=0 // pred_region
    _
  $region21: #{_lambda_.1} parent=0 // pred_fallthru
    _
  // Predicated region
  $region22: #{_lambda_.1} parent=0 // pred_check
    _
  $region23: #{_lambda_.1} parent=0 // pred_check_branch
    %2103 = sbr.rel (0) target = $region25
  $region24: #{_lambda_.1} parent=0 // pred_region
    _
  $region25: #{_lambda_.1} parent=0 // pred_fallthru
    _

</llo_original>
